<compile_context>
chip_gen: v7x
topology: tpu7x:2x2x1
jax: 0.10.0
libtpu: 0.0.40
codegen_flags: <defaults>
</compile_context>

<pallas_src>
from math import sqrt

import jax
import jax.numpy as jnp
from jax.experimental import pallas as pl
from jax.experimental.pallas import tpu as pltpu


def attention_kernel(len_ref, pq_ref, mem_ref, pmem_ref, x_ref, wcd_ref, v_ref,
                     ctx_ref, aw_ref):
    # per-grid-step shapes (bb = batch block, Tp = lane-aligned padded time):
    #   len_ref  (bb, 1)       i32  per-row valid length (0 for padded rows)
    #   pq_ref   (bb, A, 1)    f32  hoisted query projection
    #   mem_ref  (bb, Tp, E)   bf16 encoder memory
    #   pmem_ref (bb, A, Tp)   bf16 processed memory (time in lanes)
    #   x_ref    (bb, 2K, Tp)  bf16 im2col of padded attention-weight history
    #   wcd_ref  (1, A, 2K)    bf16 fused location_conv * location_dense weight
    #   v_ref    (1, A, 1)     f32  energy projection vector
    #   ctx_ref  (bb, E)       f32  attention context
    #   aw_ref   (bb, Tp)      f32  attention weights (lane-dense)
    bb, A, Tp = pmem_ref.shape
    c2k = x_ref.shape[1]

    # Fused location conv + location dense: batched (A, 2K) @ (2K, Tp) on the
    # MXU, bf16 operands, f32 accumulation.  Time stays in the lane axis.
    w_b = jnp.broadcast_to(wcd_ref[...], (bb, A, c2k))
    paw = jax.lax.dot_general(
        w_b, x_ref[...],
        dimension_numbers=(((2,), (1,)), ((0,), (0,))),
        preferred_element_type=jnp.float32)                       # (bb, A, Tp)

    # energies = v . tanh(pq + paw + pmem)   (VPU mul + EUP tanh, f32;
    # reduction over the sublane (A) axis keeps the lane-dense Tp layout)
    e = jnp.tanh(pq_ref[...] + paw + pmem_ref[...].astype(jnp.float32))
    energies = jnp.sum(e * v_ref[...], axis=1)                    # (bb, Tp)

    # additive mask built in-kernel from per-row valid lengths:
    # valid t < len -> keep, padded / masked -> -1e30 (no -inf NaN hazard)
    col = jax.lax.broadcasted_iota(jnp.int32, (bb, Tp), 1)
    energies = jnp.where(col < len_ref[...], energies, jnp.float32(-1e30))

    # masked softmax over (padded) time, f32, exact normalization
    m = jnp.max(energies, axis=-1, keepdims=True)
    ex = jnp.exp(energies - m)
    w = ex / jnp.sum(ex, axis=-1, keepdims=True)                  # (bb, Tp)
    aw_ref[...] = w

    # attention_context = bmm(weights, memory): bf16 operands, f32 accumulation
    ctx = jnp.einsum('bqt,bte->bqe', w[:, None, :].astype(mem_ref.dtype),
                     mem_ref[...], preferred_element_type=jnp.float32)
    ctx_ref[...] = ctx[:, 0, :]


def attention_forward(query, memory, processed_memory, attention_weights_cat, mask,
                      wq, wconv, wd, vw, *, bb=8, lane=128):
    # Per-generation tiling notes:
    #  * v5e/v6e (128 MiB VMEM): bb=16 halves grid-step overhead and lengthens
    #    DMA bursts for realistic shapes (the vmem limit below scales with bb).
    #  * v7x (64 MiB VMEM, 2 TCs): keep bb<=8; with B > 8 this gives nb >= 2 so
    #    the "parallel" grid axis shards across both TensorCores.
    B, T, E = memory.shape
    A = processed_memory.shape[2]
    F_, C, K = wconv.shape          # C == 2 (prev + cumulative attention weights)
    p = (K - 1) // 2
    hp = jax.lax.Precision.HIGHEST
    f32 = jnp.float32
    bf16 = jnp.bfloat16

    Tp = ((T + lane - 1) // lane) * lane          # lane-dense time
    Bp = ((B + bb - 1) // bb) * bb                # sublane-aligned batch blocks
    nb = Bp // bb

    # hoisted query projection: (B, R) @ (R, A) -> (Bp, A, 1)
    pq = jnp.einsum('br,ar->ba', query.astype(f32), wq.astype(f32), precision=hp)
    pq = jnp.pad(pq, ((0, Bp - B), (0, 0)))[:, :, None]

    # fused conv+dense weight (1, A, K*C): wcd[0,a,k*C+c] = sum_f wconv[f,c,k]*wd[a,f]
    wcd = jnp.einsum('fck,af->akc', wconv.astype(f32), wd.astype(f32),
                     precision=hp).reshape(A, K * C).astype(bf16)[None]

    # glue: F.pad(awc, (1, 0)) + conv "same" padding p, plus right-pad up to Tp.
    # im2col, time-in-lanes: X[b, k*C + c, t] = awc_padded[b, c, t + k]
    awc_p = jnp.pad(attention_weights_cat.astype(f32),
                    ((0, Bp - B), (0, 0), (1 + p, Tp - T + p)))   # (Bp, C, Tp+2p)
    x = jnp.concatenate([awc_p[:, :, k:k + Tp] for k in range(K)],
                        axis=1).astype(bf16)                      # (Bp, K*C, Tp)

    mem_p = jnp.pad(memory.astype(f32),
                    ((0, Bp - B), (0, Tp - T), (0, 0))).astype(bf16)   # (Bp,Tp,E)
    pmem_p = jnp.transpose(
        jnp.pad(processed_memory.astype(f32), ((0, Bp - B), (0, Tp - T), (0, 0))),
        (0, 2, 1)).astype(bf16)                                   # (Bp, A, Tp)

    # per-row valid lengths (Tacotron2 suffix padding mask: True = padded).
    # Fully-padded batch rows (B..Bp) get length 0 -> uniform softmax, sliced off.
    valid = jnp.sum(jnp.logical_not(mask), axis=1).astype(jnp.int32)
    lens = jnp.zeros((Bp, 1), jnp.int32).at[:B, 0].set(valid)

    # explicit scoped-VMEM budget from the double-buffered block footprint
    step_bytes = (bb * (Tp * E * 2 + A * Tp * 2 + K * C * Tp * 2 + A * 4 + 4)
                  + A * K * C * 2 + A * 4             # shared weights
                  + bb * (E * 4 + Tp * 4))            # outputs
    interm_bytes = 4 * bb * A * Tp * 4                # paw / e / ev f32 + slack
    vmem_limit = int(min(max(2 * step_bytes + interm_bytes + (2 << 20), 16 << 20),
                         64 << 20))

    ctx, aw = pl.pallas_call(
        attention_kernel,
        out_shape=(jax.ShapeDtypeStruct((Bp, E), jnp.float32),
                   jax.ShapeDtypeStruct((Bp, Tp), jnp.float32)),
        grid=(nb,),
        in_specs=[
            pl.BlockSpec((bb, 1), lambda b: (b, 0)),              # valid lengths
            pl.BlockSpec((bb, A, 1), lambda b: (b, 0, 0)),        # pq
            pl.BlockSpec((bb, Tp, E), lambda b: (b, 0, 0)),       # memory (bf16)
            pl.BlockSpec((bb, A, Tp), lambda b: (b, 0, 0)),       # processed memory
            pl.BlockSpec((bb, K * C, Tp), lambda b: (b, 0, 0)),   # im2col X
            pl.BlockSpec((1, A, K * C), lambda b: (0, 0, 0)),     # fused conv+dense W
            pl.BlockSpec((1, A, 1), lambda b: (0, 0, 0)),         # v
        ],
        out_specs=(pl.BlockSpec((bb, E), lambda b: (b, 0)),
                   pl.BlockSpec((bb, Tp), lambda b: (b, 0))),
        compiler_params=pltpu.CompilerParams(
            dimension_semantics=("parallel",),
            vmem_limit_bytes=vmem_limit),
    )(lens, pq, mem_p, pmem_p, x, wcd, vw.astype(f32)[:, :, None])

    return ctx[:B], aw[:B, :T]


def reference_forward(query, memory, processed_memory, attention_weights_cat, mask,
                      wq, wconv, wd, vw):
    # pure-JAX mirror of the PyTorch forward (HIGHEST precision matmuls)
    B, T, E = memory.shape
    F_, _, K = wconv.shape
    p = (K - 1) // 2
    hp = jax.lax.Precision.HIGHEST
    pq = jnp.einsum('br,ar->ba', query, wq, precision=hp)[:, None, :]       # (B,1,A)
    awc_p = jnp.pad(attention_weights_cat, ((0, 0), (0, 0), (1 + p, p)))    # (B,2,Tpad)
    conv = jnp.zeros((B, F_, T), jnp.float32)
    for t in range(K):  # torch conv1d is cross-correlation
        conv = conv + jnp.einsum('bct,fc->bft', awc_p[:, :, t:t + T],
                                 wconv[:, :, t], precision=hp)
    paw = jnp.einsum('bft,af->bta', conv, wd, precision=hp)                 # (B,T,A)
    e = jnp.tanh(pq + paw + processed_memory)
    energies = jnp.einsum('bta,a->bt', e, vw[0], precision=hp)              # (B,T)
    align = jnp.where(mask, -jnp.inf, energies)
    w = jax.nn.softmax(align, axis=1)
    ctx = jnp.einsum('bt,bte->be', w, memory, precision=hp)
    return ctx, w


if __name__ == "__main__":
    # small shapes consistent with the module
    B = 2
    attention_rnn_dim = 32       # R
    embedding_dim = 32           # E
    attention_dim = 16           # A
    attention_location_n_filters = 8    # F
    attention_location_kernel_size = 5  # K
    T = 8                        # memory / max_time length
    Tw = T - 1                   # attention_weights_cat length (module pads by 1)

    key = jax.random.PRNGKey(0)
    ks = jax.random.split(key, 8)

    query = jax.random.normal(ks[0], (B, attention_rnn_dim), jnp.float32)
    memory = jax.random.normal(ks[1], (B, T, embedding_dim), jnp.float32)
    processed_memory = jax.random.normal(ks[2], (B, T, attention_dim), jnp.float32)
    attention_weights_cat = jax.random.uniform(ks[3], (B, 2, Tw), jnp.float32)

    lengths = jnp.array([T, T - 2], jnp.int32)
    mask = jnp.arange(T)[None, :] >= lengths[:, None]          # True = padded

    # deterministic xavier-ish parameter init (module __init__ shapes)
    wq = jax.random.normal(ks[4], (attention_dim, attention_rnn_dim), jnp.float32) \
        * (1.0 / sqrt(attention_rnn_dim))
    wconv = jax.random.normal(
        ks[5], (attention_location_n_filters, 2, attention_location_kernel_size),
        jnp.float32) * (1.0 / sqrt(2 * attention_location_kernel_size))
    wd = jax.random.normal(ks[6], (attention_dim, attention_location_n_filters),
                           jnp.float32) * (1.0 / sqrt(attention_location_n_filters))
    vw = jax.random.normal(ks[7], (1, attention_dim), jnp.float32) \
        * (1.0 / sqrt(attention_dim))

    ctx, aw = attention_forward(query, memory, processed_memory,
                                attention_weights_cat, mask, wq, wconv, wd, vw)
    jax.block_until_ready((ctx, aw))

    ctx_ref, aw_ref = reference_forward(query, memory, processed_memory,
                                        attention_weights_cat, mask,
                                        wq, wconv, wd, vw)
    assert ctx.shape == (B, embedding_dim) and aw.shape == (B, T)
    assert jnp.allclose(aw, aw_ref, atol=1e-2, rtol=1e-2)
    assert jnp.allclose(ctx, ctx_ref, atol=1e-2, rtol=1e-2)

    print("KERNEL_OK")
</pallas_src>

<mosaic_0001>
module attributes {stable_mosaic.version = 11 : i64} {
  func.func @attention_kernel(%arg0: i32, %arg1: memref<8x1xi32, #tpu.memory_space<vmem>>, %arg2: memref<8x16x1xf32, #tpu.memory_space<vmem>>, %arg3: memref<8x128x32xbf16, #tpu.memory_space<vmem>>, %arg4: memref<8x16x128xbf16, #tpu.memory_space<vmem>>, %arg5: memref<8x10x128xbf16, #tpu.memory_space<vmem>>, %arg6: memref<1x16x10xbf16, #tpu.memory_space<vmem>>, %arg7: memref<1x16x1xf32, #tpu.memory_space<vmem>>, %arg8: memref<8x32xf32, #tpu.memory_space<vmem>>, %arg9: memref<8x128xf32, #tpu.memory_space<vmem>>) attributes {dimension_semantics = [#tpu.dimension_semantics<parallel>], iteration_bounds = array<i64: 1>, scalar_prefetch = 0 : i64, scratch_operands = 0 : i64, tpu.core_type = #tpu.core_type<tc>, window_params = [{transform_indices = @transform_0, window_bounds = array<i64: 8, 1>}, {transform_indices = @transform_1, window_bounds = array<i64: 8, 16, 1>}, {transform_indices = @transform_2, window_bounds = array<i64: 8, 128, 32>}, {transform_indices = @transform_3, window_bounds = array<i64: 8, 16, 128>}, {transform_indices = @transform_4, window_bounds = array<i64: 8, 10, 128>}, {pipeline_mode = #tpu.pipeline_mode<synchronous>, transform_indices = @transform_5, window_bounds = array<i64: 1, 16, 10>}, {pipeline_mode = #tpu.pipeline_mode<synchronous>, transform_indices = @transform_6, window_bounds = array<i64: 1, 16, 1>}, {transform_indices = @transform_7, window_bounds = array<i64: 8, 32>}, {transform_indices = @transform_8, window_bounds = array<i64: 8, 128>}]} {
    %c0 = arith.constant 0 : index
    %c0_0 = arith.constant 0 : index
    %c0_1 = arith.constant 0 : index
    %0 = vector.load %arg6[%c0, %c0_0, %c0_1] : memref<1x16x10xbf16, #tpu.memory_space<vmem>>, vector<1x16x10xbf16>
    %1 = vector.shape_cast %0 : vector<1x16x10xbf16> to vector<1x16x10xbf16>
    %2 = vector.broadcast %1 : vector<1x16x10xbf16> to vector<8x16x10xbf16>
    %c0_2 = arith.constant 0 : index
    %c0_3 = arith.constant 0 : index
    %c0_4 = arith.constant 0 : index
    %3 = vector.load %arg5[%c0_2, %c0_3, %c0_4] : memref<8x10x128xbf16, #tpu.memory_space<vmem>>, vector<8x10x128xbf16>
    %cst = arith.constant dense<0.000000e+00> : vector<8x16x128xf32>
    %4 = tpu.matmul %2, %3, %cst {dimension_numbers = #tpu.dot_dimension_numbers<[2], [1], [1], [2], [0, 0, 0, 1, 1, 2], [0], [0]>} : vector<8x16x10xbf16>, vector<8x10x128xbf16>, vector<8x16x128xf32> -> vector<8x16x128xf32>
    %c0_5 = arith.constant 0 : index
    %c0_6 = arith.constant 0 : index
    %c0_7 = arith.constant 0 : index
    %5 = vector.load %arg2[%c0_5, %c0_6, %c0_7] : memref<8x16x1xf32, #tpu.memory_space<vmem>>, vector<8x16x1xf32>
    %6 = vector.broadcast %5 : vector<8x16x1xf32> to vector<8x16x128xf32>
    %7 = arith.addf %6, %4 : vector<8x16x128xf32>
    %c0_8 = arith.constant 0 : index
    %c0_9 = arith.constant 0 : index
    %c0_10 = arith.constant 0 : index
    %8 = vector.load %arg4[%c0_8, %c0_9, %c0_10] : memref<8x16x128xbf16, #tpu.memory_space<vmem>>, vector<8x16x128xbf16>
    %9 = arith.extf %8 : vector<8x16x128xbf16> to vector<8x16x128xf32>
    %10 = arith.addf %7, %9 : vector<8x16x128xf32>
    %11 = math.tanh %10 : vector<8x16x128xf32>
    %c0_11 = arith.constant 0 : index
    %c0_12 = arith.constant 0 : index
    %c0_13 = arith.constant 0 : index
    %12 = vector.load %arg7[%c0_11, %c0_12, %c0_13] : memref<1x16x1xf32, #tpu.memory_space<vmem>>, vector<1x16x1xf32>
    %13 = vector.broadcast %12 : vector<1x16x1xf32> to vector<8x16x128xf32>
    %14 = arith.mulf %11, %13 : vector<8x16x128xf32>
    %cst_14 = arith.constant dense<0.000000e+00> : vector<8x128xf32>
    %15 = vector.multi_reduction <add>, %14, %cst_14 [1] : vector<8x16x128xf32> to vector<8x128xf32>
    %16 = tpu.iota {dimensions = array<i32: 1>} : vector<8x128xi32>
    %c0_15 = arith.constant 0 : index
    %c0_16 = arith.constant 0 : index
    %17 = vector.load %arg1[%c0_15, %c0_16] : memref<8x1xi32, #tpu.memory_space<vmem>>, vector<8x1xi32>
    %18 = vector.broadcast %17 : vector<8x1xi32> to vector<8x128xi32>
    %19 = arith.cmpi slt, %16, %18 : vector<8x128xi32>
    %cst_17 = arith.constant -1.000000e+30 : f32
    %20 = vector.broadcast %cst_17 : f32 to vector<8x128xf32>
    %21 = arith.select %19, %15, %20 : vector<8x128xi1>, vector<8x128xf32>
    %cst_18 = arith.constant dense<0xFF800000> : vector<8xf32>
    %22 = vector.multi_reduction <maximumf>, %21, %cst_18 [1] : vector<8x128xf32> to vector<8xf32>
    %23 = vector.shape_cast %22 : vector<8xf32> to vector<8x1xf32>
    %24 = vector.broadcast %23 : vector<8x1xf32> to vector<8x128xf32>
    %25 = arith.subf %21, %24 : vector<8x128xf32>
    %26 = math.exp %25 : vector<8x128xf32>
    %cst_19 = arith.constant dense<0.000000e+00> : vector<8xf32>
    %27 = vector.multi_reduction <add>, %26, %cst_19 [1] : vector<8x128xf32> to vector<8xf32>
    %28 = vector.shape_cast %27 : vector<8xf32> to vector<8x1xf32>
    %29 = vector.broadcast %28 : vector<8x1xf32> to vector<8x128xf32>
    %30 = arith.divf %26, %29 : vector<8x128xf32>
    %c0_20 = arith.constant 0 : index
    %c0_21 = arith.constant 0 : index
    %31 = vector.load %arg9[%c0_20, %c0_21] : memref<8x128xf32, #tpu.memory_space<vmem>>, vector<8x128xf32>
    tpu.vector_store %arg9[%c0_20, %c0_21], %30 {strides = array<i32>} : memref<8x128xf32, #tpu.memory_space<vmem>>, vector<8x128xf32>,
    %32 = vector.shape_cast %30 : vector<8x128xf32> to vector<8x1x128xf32>
    %33 = arith.truncf %32 : vector<8x1x128xf32> to vector<8x1x128xbf16>
    %c0_22 = arith.constant 0 : index
    %c0_23 = arith.constant 0 : index
    %c0_24 = arith.constant 0 : index
    %34 = vector.load %arg3[%c0_22, %c0_23, %c0_24] : memref<8x128x32xbf16, #tpu.memory_space<vmem>>, vector<8x128x32xbf16>
    "tpu.trace_start"() <{level = 10 : i32, message = "bqt,bte->bqe"}> : () -> ()
    %cst_25 = arith.constant dense<0.000000e+00> : vector<8x1x32xf32>
    %35 = tpu.matmul %33, %34, %cst_25 {dimension_numbers = #tpu.dot_dimension_numbers<[2], [1], [1], [2], [0, 0, 0, 1, 1, 2], [0], [0]>} : vector<8x1x128xbf16>, vector<8x128x32xbf16>, vector<8x1x32xf32> -> vector<8x1x32xf32>
    "tpu.trace_stop"() : () -> ()
    %36 = vector.shape_cast %35 : vector<8x1x32xf32> to vector<8x32xf32>
    %c0_26 = arith.constant 0 : index
    %c0_27 = arith.constant 0 : index
    %37 = vector.load %arg8[%c0_26, %c0_27] : memref<8x32xf32, #tpu.memory_space<vmem>>, vector<8x32xf32>
    tpu.vector_store %arg8[%c0_26, %c0_27], %36 {strides = array<i32>} : memref<8x32xf32, #tpu.memory_space<vmem>>, vector<8x32xf32>,
    return
  }
  func.func @transform_0(%arg0: i32) -> (i32, i32) {
    %c0_i32 = arith.constant 0 : i32
    %c0_i32_0 = arith.constant 0 : i32
    return %arg0, %c0_i32 : i32, i32
  }
  func.func @transform_1(%arg0: i32) -> (i32, i32, i32) {
    %c0_i32 = arith.constant 0 : i32
    %c0_i32_0 = arith.constant 0 : i32
    %c0_i32_1 = arith.constant 0 : i32
    return %arg0, %c0_i32, %c0_i32_0 : i32, i32, i32
  }
  func.func @transform_2(%arg0: i32) -> (i32, i32, i32) {
    %c0_i32 = arith.constant 0 : i32
    %c0_i32_0 = arith.constant 0 : i32
    %c0_i32_1 = arith.constant 0 : i32
    return %arg0, %c0_i32, %c0_i32_0 : i32, i32, i32
  }
  func.func @transform_3(%arg0: i32) -> (i32, i32, i32) {
    %c0_i32 = arith.constant 0 : i32
    %c0_i32_0 = arith.constant 0 : i32
    %c0_i32_1 = arith.constant 0 : i32
    return %arg0, %c0_i32, %c0_i32_0 : i32, i32, i32
  }
  func.func @transform_4(%arg0: i32) -> (i32, i32, i32) {
    %c0_i32 = arith.constant 0 : i32
    %c0_i32_0 = arith.constant 0 : i32
    %c0_i32_1 = arith.constant 0 : i32
    return %arg0, %c0_i32, %c0_i32_0 : i32, i32, i32
  }
  func.func @transform_5(%arg0: i32) -> (i32, i32, i32) {
    %c0_i32 = arith.constant 0 : i32
    %c0_i32_0 = arith.constant 0 : i32
    %c0_i32_1 = arith.constant 0 : i32
    %c0_i32_2 = arith.constant 0 : i32
    return %c0_i32, %c0_i32_0, %c0_i32_1 : i32, i32, i32
  }
  func.func @transform_6(%arg0: i32) -> (i32, i32, i32) {
    %c0_i32 = arith.constant 0 : i32
    %c0_i32_0 = arith.constant 0 : i32
    %c0_i32_1 = arith.constant 0 : i32
    %c0_i32_2 = arith.constant 0 : i32
    return %c0_i32, %c0_i32_0, %c0_i32_1 : i32, i32, i32
  }
  func.func @transform_7(%arg0: i32) -> (i32, i32) {
    %c0_i32 = arith.constant 0 : i32
    %c0_i32_0 = arith.constant 0 : i32
    return %arg0, %c0_i32 : i32, i32
  }
  func.func @transform_8(%arg0: i32) -> (i32, i32) {
    %c0_i32 = arith.constant 0 : i32
    %c0_i32_0 = arith.constant 0 : i32
    return %arg0, %c0_i32 : i32, i32
  }
}

</mosaic_0001>

<llo_original>
// kernel: tpu_custom_call.1
$region0: #{tpu_custom_call.1}
  #allocation0 [shape = 'u32[]', space=smem, size = 0x4, offset = 0x4, fixed_abs, tag = 'smem constant byte address 0x4 - core index']
  #allocation1 [shape = 'u32[144,128]{1,0:T(1,128)}', space=vmem, size = 0x12000, scoped, tag = 'internal scratch']
  %s0 = inlined_call_operand.vmem [shape: s32[8,1], index: 0, kind: input, shape index: {}]
  %s1 = inlined_call_operand.vmem [shape: f32[8,16,1], index: 1, kind: input, shape index: {}]
  %s2 = inlined_call_operand.vmem [shape: bf16[8,128,32], index: 2, kind: input, shape index: {}]
  %s3 = inlined_call_operand.vmem [shape: bf16[8,16,128], index: 3, kind: input, shape index: {}]
  %s4 = inlined_call_operand.vmem [shape: bf16[8,10,128], index: 4, kind: input, shape index: {}]
  %s5 = inlined_call_operand.vmem [shape: bf16[1,16,10], index: 5, kind: input, shape index: {}]
  %s6 = inlined_call_operand.vmem [shape: f32[1,16,1], index: 6, kind: input, shape index: {}]
  %s7 = inlined_call_operand.hbm [shape: f32[8,32], index: 7, kind: output, shape index: {0}]
  %s8 = inlined_call_operand.hbm [shape: f32[8,128], index: 8, kind: output, shape index: {1}]
  %9 = xla_tuple %s7, %s8
  %s10 = sld [smem:[#allocation0]]
  $region46: #{tpu_custom_call.1} parent=0
    _
  %s12 = ssub.s32 1, %s10
  %s13 = scalar_select 0, %s12, %s10
  $region1: #{tpu_custom_call.1} parent=0
    #allocation2 [shape = 'u8[4096]{0}', space=vmem, size = 0x1000, scoped, tag = 'output window, operand 0, single buffered']
    #allocation3 [shape = 's32[1]{0}', space=sflag, size = 0x4, scoped, tag = 'scoped memory for tpu_custom_call.1']
    #allocation4 [shape = 'u8[4096]{0}', space=vmem, size = 0x1000, scoped, tag = 'output window, operand 1, single buffered']
    #allocation5 [shape = 's32[1]{0}', space=sflag, size = 0x4, scoped, tag = 'scoped memory for tpu_custom_call.1']
    %14 = vsyncpa [#allocation3], 0
    %15 = vsyncpa [#allocation5], 0
    // Predicated region
    $region2: #{tpu_custom_call.1} parent=1 // pred_check
      _
    $region3: #{tpu_custom_call.1} parent=1 // pred_check_branch
      %17 = sbr.rel (0) target = $region5
    $region4: #{tpu_custom_call.1} parent=1 // pred_region
      _
    $region5: #{tpu_custom_call.1} parent=1 // pred_fallthru
      _
    // Predicated region
    $region6: #{tpu_custom_call.1} parent=1 // pred_check
      _
    $region7: #{tpu_custom_call.1} parent=1 // pred_check_branch
      %19 = sbr.rel (0) target = $region9
    $region8: #{tpu_custom_call.1} parent=1 // pred_region
      _
    $region9: #{tpu_custom_call.1} parent=1 // pred_fallthru
      _
    // Predicated region
    $region10: #{tpu_custom_call.1} parent=1 // pred_check
      _
    $region11: #{tpu_custom_call.1} parent=1 // pred_check_branch
      %21 = sbr.rel (0) target = $region13
    $region12: #{tpu_custom_call.1} parent=1 // pred_region
      _
    $region13: #{tpu_custom_call.1} parent=1 // pred_fallthru
      _
    // Predicated region
    $region14: #{tpu_custom_call.1} parent=1 // pred_check
      _
    $region15: #{tpu_custom_call.1} parent=1 // pred_check_branch
      %23 = sbr.rel (0) target = $region17
    $region16: #{tpu_custom_call.1} parent=1 // pred_region
      _
    $region17: #{tpu_custom_call.1} parent=1 // pred_fallthru
      _
    // Predicated region
    $region18: #{tpu_custom_call.1} parent=1 // pred_check
      _
    $region19: #{tpu_custom_call.1} parent=1 // pred_check_branch
      %25 = sbr.rel (0) target = $region21
    $region20: #{tpu_custom_call.1} parent=1 // pred_region
      _
    $region21: #{tpu_custom_call.1} parent=1 // pred_fallthru
      _
    // Predicated region
    $region22: #{tpu_custom_call.1} parent=1 // pred_check
      _
    $region23: #{tpu_custom_call.1} parent=1 // pred_check_branch
      %27 = sbr.rel (0) target = $region25
    $region24: #{tpu_custom_call.1} parent=1 // pred_region
      _
    $region25: #{tpu_custom_call.1} parent=1 // pred_fallthru
      _
    // Predicated region
    $region26: #{tpu_custom_call.1} parent=1 // pred_check
      _
    $region27: #{tpu_custom_call.1} parent=1 // pred_check_branch
      %29 = sbr.rel (0) target = $region29
    $region28: #{tpu_custom_call.1} parent=1 // pred_region
      _
    $region29: #{tpu_custom_call.1} parent=1 // pred_fallthru
      _
    %v31 = vld [vmem:[%s5] sm:$0xf]
    %v32 = vld [vmem:[%s5 + $0x4] sm:$0xf]
    %v33 = vld [vmem:[%s4] sm:$0xf]
    %v34 = vld [vmem:[%s4 + $0x4] sm:$0x1]
    %v35 = vld [vmem:[%s4 + $0x8] sm:$0xf]
    %v36 = vld [vmem:[%s4 + $0xc] sm:$0x1]
    %v37 = vld [vmem:[%s4 + $0x10] sm:$0xf]
    %v38 = vld [vmem:[%s4 + $0x14] sm:$0x1]
    %v39 = vld [vmem:[%s4 + $0x18] sm:$0xf]
    %v40 = vld [vmem:[%s4 + $0x1c] sm:$0x1]
    %v41 = vld [vmem:[%s4 + $0x20] sm:$0xf]
    %v42 = vld [vmem:[%s4 + $0x24] sm:$0x1]
    %v43 = vld [vmem:[%s4 + $0x28] sm:$0xf]
    %v44 = vld [vmem:[%s4 + $0x2c] sm:$0x1]
    %v45 = vld [vmem:[%s4 + $0x30] sm:$0xf]
    %v46 = vld [vmem:[%s4 + $0x34] sm:$0x1]
    %v47 = vld [vmem:[%s4 + $0x38] sm:$0xf]
    %v48 = vld [vmem:[%s4 + $0x3c] sm:$0x1]
    %v51 = vunpack.c.l.b16 %v31
    %v52 = vunpack.c.l.b16 %v32
    %v53 = vpack.c.b16 %v52, %v51
    %v56 = vunpack.c.l.b16 %v33
    %v57 = vunpack.c.l.b16 %v34
    %v58 = vpack.c.b16 %v57, %v56
    %vm59 = vcmask 80896
    %v61 = vsel %vm59, %v53, 0
    %vm63 = vcmask 1044480
    %v65 = vsel %vm63, %v58, 0
    %67 = vmatprep.subr.bf16.mxu0 0
    %68 = vmatpush1.bf16.msra.mxu0 %v65
    %69 = vmatprep.subr.bf16.mxu0 0
    %70 = vmatpush1.bf16.msra.mxu0 0
    %71 = vmatprep.subr.bf16.mxu0 0
    %72 = vmatpush1.bf16.msra.mxu0 0
    %73 = vmatprep.subr.bf16.mxu0 0
    %74 = vmatpush1.bf16.msra.mxu0 0
    %75 = vmatprep.subr.bf16.mxu0 0
    %76 = vmatpush1.bf16.msra.mxu0 0
    %77 = vmatprep.subr.bf16.mxu0 0
    %78 = vmatpush1.bf16.msra.mxu0 0
    %79 = vmatprep.subr.bf16.mxu0 0
    %80 = vmatpush1.bf16.msra.mxu0 0
    %81 = vmatprep.subr.bf16.mxu0 0
    %82 = vmatpush1.bf16.msra.mxu0 0
    %83 = vmatprep.subr.bf16.mxu0 0
    %84 = vmatpush1.bf16.msra.mxu0 0
    %85 = vmatprep.subr.bf16.mxu0 0
    %86 = vmatpush1.bf16.msra.mxu0 0
    %87 = vmatprep.subr.bf16.mxu0 0
    %88 = vmatpush1.bf16.msra.mxu0 0
    %89 = vmatprep.subr.bf16.mxu0 0
    %90 = vmatpush1.bf16.msra.mxu0 0
    %91 = vmatprep.subr.bf16.mxu0 0
    %92 = vmatpush1.bf16.msra.mxu0 0
    %93 = vmatprep.subr.bf16.mxu0 0
    %94 = vmatpush1.bf16.msra.mxu0 0
    %95 = vmatprep.subr.bf16.mxu0 0
    %96 = vmatpush1.bf16.msra.mxu0 0
    %97 = vmatprep.subr.bf16.mxu0 0
    %98 = vmatpush1.bf16.msra.mxu0 0
    %99 = vmatprep.mubr.bf16.mxu0 0
    %100 = vmatmul.mubr.bf16.gmra.mrb[0].mxu0 %v61
    %v101 = vpop.f32.mrb[0].mxu0
    %v102 = vadd.f32 0.0, %v101
    %v103 = vpop.f32.mrb[0].mxu0
    %v104 = vpop.f32.mrb[0].mxu0
    %v105 = vadd.f32 0.0, %v104
    %v106 = vpop.f32.mrb[0].mxu0
    %107 = vdwg.mxu0
    %v110 = vunpack.c.l.b16 %v35
    %v111 = vunpack.c.l.b16 %v36
    %v112 = vpack.c.b16 %v111, %v110
    %v114 = vsel %vm63, %v112, 0
    %116 = vmatprep.subr.bf16.mxu0 0
    %117 = vmatpush1.bf16.msra.mxu0 %v114
    %118 = vmatprep.subr.bf16.mxu0 0
    %119 = vmatpush1.bf16.msra.mxu0 0
    %120 = vmatprep.subr.bf16.mxu0 0
    %121 = vmatpush1.bf16.msra.mxu0 0
    %122 = vmatprep.subr.bf16.mxu0 0
    %123 = vmatpush1.bf16.msra.mxu0 0
    %124 = vmatprep.subr.bf16.mxu0 0
    %125 = vmatpush1.bf16.msra.mxu0 0
    %126 = vmatprep.subr.bf16.mxu0 0
    %127 = vmatpush1.bf16.msra.mxu0 0
    %128 = vmatprep.subr.bf16.mxu0 0
    %129 = vmatpush1.bf16.msra.mxu0 0
    %130 = vmatprep.subr.bf16.mxu0 0
    %131 = vmatpush1.bf16.msra.mxu0 0
    %132 = vmatprep.subr.bf16.mxu0 0
    %133 = vmatpush1.bf16.msra.mxu0 0
    %134 = vmatprep.subr.bf16.mxu0 0
    %135 = vmatpush1.bf16.msra.mxu0 0
    %136 = vmatprep.subr.bf16.mxu0 0
    %137 = vmatpush1.bf16.msra.mxu0 0
    %138 = vmatprep.subr.bf16.mxu0 0
    %139 = vmatpush1.bf16.msra.mxu0 0
    %140 = vmatprep.subr.bf16.mxu0 0
    %141 = vmatpush1.bf16.msra.mxu0 0
    %142 = vmatprep.subr.bf16.mxu0 0
    %143 = vmatpush1.bf16.msra.mxu0 0
    %144 = vmatprep.subr.bf16.mxu0 0
    %145 = vmatpush1.bf16.msra.mxu0 0
    %146 = vmatprep.subr.bf16.mxu0 0
    %147 = vmatpush1.bf16.msra.mxu0 0
    %148 = vmatprep.mubr.bf16.mxu0 0
    %149 = vmatmul.mubr.bf16.gmra.mrb[0].mxu0 %v61
    %v150 = vpop.f32.mrb[0].mxu0
    %v151 = vadd.f32 0.0, %v150
    %v152 = vpop.f32.mrb[0].mxu0
    %v153 = vpop.f32.mrb[0].mxu0
    %v154 = vadd.f32 0.0, %v153
    %v155 = vpop.f32.mrb[0].mxu0
    %156 = vdwg.mxu0
    %v159 = vunpack.c.l.b16 %v37
    %v160 = vunpack.c.l.b16 %v38
    %v161 = vpack.c.b16 %v160, %v159
    %v163 = vsel %vm63, %v161, 0
    %165 = vmatprep.subr.bf16.mxu0 0
    %166 = vmatpush1.bf16.msra.mxu0 %v163
    %167 = vmatprep.subr.bf16.mxu0 0
    %168 = vmatpush1.bf16.msra.mxu0 0
    %169 = vmatprep.subr.bf16.mxu0 0
    %170 = vmatpush1.bf16.msra.mxu0 0
    %171 = vmatprep.subr.bf16.mxu0 0
    %172 = vmatpush1.bf16.msra.mxu0 0
    %173 = vmatprep.subr.bf16.mxu0 0
    %174 = vmatpush1.bf16.msra.mxu0 0
    %175 = vmatprep.subr.bf16.mxu0 0
    %176 = vmatpush1.bf16.msra.mxu0 0
    %177 = vmatprep.subr.bf16.mxu0 0
    %178 = vmatpush1.bf16.msra.mxu0 0
    %179 = vmatprep.subr.bf16.mxu0 0
    %180 = vmatpush1.bf16.msra.mxu0 0
    %181 = vmatprep.subr.bf16.mxu0 0
    %182 = vmatpush1.bf16.msra.mxu0 0
    %183 = vmatprep.subr.bf16.mxu0 0
    %184 = vmatpush1.bf16.msra.mxu0 0
    %185 = vmatprep.subr.bf16.mxu0 0
    %186 = vmatpush1.bf16.msra.mxu0 0
    %187 = vmatprep.subr.bf16.mxu0 0
    %188 = vmatpush1.bf16.msra.mxu0 0
    %189 = vmatprep.subr.bf16.mxu0 0
    %190 = vmatpush1.bf16.msra.mxu0 0
    %191 = vmatprep.subr.bf16.mxu0 0
    %192 = vmatpush1.bf16.msra.mxu0 0
    %193 = vmatprep.subr.bf16.mxu0 0
    %194 = vmatpush1.bf16.msra.mxu0 0
    %195 = vmatprep.subr.bf16.mxu0 0
    %196 = vmatpush1.bf16.msra.mxu0 0
    %197 = vmatprep.mubr.bf16.mxu0 0
    %198 = vmatmul.mubr.bf16.gmra.mrb[0].mxu0 %v61
    %v199 = vpop.f32.mrb[0].mxu0
    %v200 = vadd.f32 0.0, %v199
    %v201 = vpop.f32.mrb[0].mxu0
    %v202 = vpop.f32.mrb[0].mxu0
    %v203 = vadd.f32 0.0, %v202
    %v204 = vpop.f32.mrb[0].mxu0
    %205 = vdwg.mxu0
    %v208 = vunpack.c.l.b16 %v39
    %v209 = vunpack.c.l.b16 %v40
    %v210 = vpack.c.b16 %v209, %v208
    %v212 = vsel %vm63, %v210, 0
    %214 = vmatprep.subr.bf16.mxu0 0
    %215 = vmatpush1.bf16.msra.mxu0 %v212
    %216 = vmatprep.subr.bf16.mxu0 0
    %217 = vmatpush1.bf16.msra.mxu0 0
    %218 = vmatprep.subr.bf16.mxu0 0
    %219 = vmatpush1.bf16.msra.mxu0 0
    %220 = vmatprep.subr.bf16.mxu0 0
    %221 = vmatpush1.bf16.msra.mxu0 0
    %222 = vmatprep.subr.bf16.mxu0 0
    %223 = vmatpush1.bf16.msra.mxu0 0
    %224 = vmatprep.subr.bf16.mxu0 0
    %225 = vmatpush1.bf16.msra.mxu0 0
    %226 = vmatprep.subr.bf16.mxu0 0
    %227 = vmatpush1.bf16.msra.mxu0 0
    %228 = vmatprep.subr.bf16.mxu0 0
    %229 = vmatpush1.bf16.msra.mxu0 0
    %230 = vmatprep.subr.bf16.mxu0 0
    %231 = vmatpush1.bf16.msra.mxu0 0
    %232 = vmatprep.subr.bf16.mxu0 0
    %233 = vmatpush1.bf16.msra.mxu0 0
    %234 = vmatprep.subr.bf16.mxu0 0
    %235 = vmatpush1.bf16.msra.mxu0 0
    %236 = vmatprep.subr.bf16.mxu0 0
    %237 = vmatpush1.bf16.msra.mxu0 0
    %238 = vmatprep.subr.bf16.mxu0 0
    %239 = vmatpush1.bf16.msra.mxu0 0
    %240 = vmatprep.subr.bf16.mxu0 0
    %241 = vmatpush1.bf16.msra.mxu0 0
    %242 = vmatprep.subr.bf16.mxu0 0
    %243 = vmatpush1.bf16.msra.mxu0 0
    %244 = vmatprep.subr.bf16.mxu0 0
    %245 = vmatpush1.bf16.msra.mxu0 0
    %246 = vmatprep.mubr.bf16.mxu0 0
    %247 = vmatmul.mubr.bf16.gmra.mrb[0].mxu0 %v61
    %v248 = vpop.f32.mrb[0].mxu0
    %v249 = vadd.f32 0.0, %v248
    %v250 = vpop.f32.mrb[0].mxu0
    %v251 = vpop.f32.mrb[0].mxu0
    %v252 = vadd.f32 0.0, %v251
    %v253 = vpop.f32.mrb[0].mxu0
    %254 = vdwg.mxu0
    %v257 = vunpack.c.l.b16 %v41
    %v258 = vunpack.c.l.b16 %v42
    %v259 = vpack.c.b16 %v258, %v257
    %v261 = vsel %vm63, %v259, 0
    %263 = vmatprep.subr.bf16.mxu0 0
    %264 = vmatpush1.bf16.msra.mxu0 %v261
    %265 = vmatprep.subr.bf16.mxu0 0
    %266 = vmatpush1.bf16.msra.mxu0 0
    %267 = vmatprep.subr.bf16.mxu0 0
    %268 = vmatpush1.bf16.msra.mxu0 0
    %269 = vmatprep.subr.bf16.mxu0 0
    %270 = vmatpush1.bf16.msra.mxu0 0
    %271 = vmatprep.subr.bf16.mxu0 0
    %272 = vmatpush1.bf16.msra.mxu0 0
    %273 = vmatprep.subr.bf16.mxu0 0
    %274 = vmatpush1.bf16.msra.mxu0 0
    %275 = vmatprep.subr.bf16.mxu0 0
    %276 = vmatpush1.bf16.msra.mxu0 0
    %277 = vmatprep.subr.bf16.mxu0 0
    %278 = vmatpush1.bf16.msra.mxu0 0
    %279 = vmatprep.subr.bf16.mxu0 0
    %280 = vmatpush1.bf16.msra.mxu0 0
    %281 = vmatprep.subr.bf16.mxu0 0
    %282 = vmatpush1.bf16.msra.mxu0 0
    %283 = vmatprep.subr.bf16.mxu0 0
    %284 = vmatpush1.bf16.msra.mxu0 0
    %285 = vmatprep.subr.bf16.mxu0 0
    %286 = vmatpush1.bf16.msra.mxu0 0
    %287 = vmatprep.subr.bf16.mxu0 0
    %288 = vmatpush1.bf16.msra.mxu0 0
    %289 = vmatprep.subr.bf16.mxu0 0
    %290 = vmatpush1.bf16.msra.mxu0 0
    %291 = vmatprep.subr.bf16.mxu0 0
    %292 = vmatpush1.bf16.msra.mxu0 0
    %293 = vmatprep.subr.bf16.mxu0 0
    %294 = vmatpush1.bf16.msra.mxu0 0
    %295 = vmatprep.mubr.bf16.mxu0 0
    %296 = vmatmul.mubr.bf16.gmra.mrb[0].mxu0 %v61
    %v297 = vpop.f32.mrb[0].mxu0
    %v298 = vadd.f32 0.0, %v297
    %v299 = vpop.f32.mrb[0].mxu0
    %v300 = vpop.f32.mrb[0].mxu0
    %v301 = vadd.f32 0.0, %v300
    %v302 = vpop.f32.mrb[0].mxu0
    %303 = vdwg.mxu0
    %v306 = vunpack.c.l.b16 %v43
    %v307 = vunpack.c.l.b16 %v44
    %v308 = vpack.c.b16 %v307, %v306
    %v310 = vsel %vm63, %v308, 0
    %312 = vmatprep.subr.bf16.mxu0 0
    %313 = vmatpush1.bf16.msra.mxu0 %v310
    %314 = vmatprep.subr.bf16.mxu0 0
    %315 = vmatpush1.bf16.msra.mxu0 0
    %316 = vmatprep.subr.bf16.mxu0 0
    %317 = vmatpush1.bf16.msra.mxu0 0
    %318 = vmatprep.subr.bf16.mxu0 0
    %319 = vmatpush1.bf16.msra.mxu0 0
    %320 = vmatprep.subr.bf16.mxu0 0
    %321 = vmatpush1.bf16.msra.mxu0 0
    %322 = vmatprep.subr.bf16.mxu0 0
    %323 = vmatpush1.bf16.msra.mxu0 0
    %324 = vmatprep.subr.bf16.mxu0 0
    %325 = vmatpush1.bf16.msra.mxu0 0
    %326 = vmatprep.subr.bf16.mxu0 0
    %327 = vmatpush1.bf16.msra.mxu0 0
    %328 = vmatprep.subr.bf16.mxu0 0
    %329 = vmatpush1.bf16.msra.mxu0 0
    %330 = vmatprep.subr.bf16.mxu0 0
    %331 = vmatpush1.bf16.msra.mxu0 0
    %332 = vmatprep.subr.bf16.mxu0 0
    %333 = vmatpush1.bf16.msra.mxu0 0
    %334 = vmatprep.subr.bf16.mxu0 0
    %335 = vmatpush1.bf16.msra.mxu0 0
    %336 = vmatprep.subr.bf16.mxu0 0
    %337 = vmatpush1.bf16.msra.mxu0 0
    %338 = vmatprep.subr.bf16.mxu0 0
    %339 = vmatpush1.bf16.msra.mxu0 0
    %340 = vmatprep.subr.bf16.mxu0 0
    %341 = vmatpush1.bf16.msra.mxu0 0
    %342 = vmatprep.subr.bf16.mxu0 0
    %343 = vmatpush1.bf16.msra.mxu0 0
    %344 = vmatprep.mubr.bf16.mxu0 0
    %345 = vmatmul.mubr.bf16.gmra.mrb[0].mxu0 %v61
    %v346 = vpop.f32.mrb[0].mxu0
    %v347 = vadd.f32 0.0, %v346
    %v348 = vpop.f32.mrb[0].mxu0
    %v349 = vpop.f32.mrb[0].mxu0
    %v350 = vadd.f32 0.0, %v349
    %v351 = vpop.f32.mrb[0].mxu0
    %352 = vdwg.mxu0
    %v355 = vunpack.c.l.b16 %v45
    %v356 = vunpack.c.l.b16 %v46
    %v357 = vpack.c.b16 %v356, %v355
    %v359 = vsel %vm63, %v357, 0
    %361 = vmatprep.subr.bf16.mxu0 0
    %362 = vmatpush1.bf16.msra.mxu0 %v359
    %363 = vmatprep.subr.bf16.mxu0 0
    %364 = vmatpush1.bf16.msra.mxu0 0
    %365 = vmatprep.subr.bf16.mxu0 0
    %366 = vmatpush1.bf16.msra.mxu0 0
    %367 = vmatprep.subr.bf16.mxu0 0
    %368 = vmatpush1.bf16.msra.mxu0 0
    %369 = vmatprep.subr.bf16.mxu0 0
    %370 = vmatpush1.bf16.msra.mxu0 0
    %371 = vmatprep.subr.bf16.mxu0 0
    %372 = vmatpush1.bf16.msra.mxu0 0
    %373 = vmatprep.subr.bf16.mxu0 0
    %374 = vmatpush1.bf16.msra.mxu0 0
    %375 = vmatprep.subr.bf16.mxu0 0
    %376 = vmatpush1.bf16.msra.mxu0 0
    %377 = vmatprep.subr.bf16.mxu0 0
    %378 = vmatpush1.bf16.msra.mxu0 0
    %379 = vmatprep.subr.bf16.mxu0 0
    %380 = vmatpush1.bf16.msra.mxu0 0
    %381 = vmatprep.subr.bf16.mxu0 0
    %382 = vmatpush1.bf16.msra.mxu0 0
    %383 = vmatprep.subr.bf16.mxu0 0
    %384 = vmatpush1.bf16.msra.mxu0 0
    %385 = vmatprep.subr.bf16.mxu0 0
    %386 = vmatpush1.bf16.msra.mxu0 0
    %387 = vmatprep.subr.bf16.mxu0 0
    %388 = vmatpush1.bf16.msra.mxu0 0
    %389 = vmatprep.subr.bf16.mxu0 0
    %390 = vmatpush1.bf16.msra.mxu0 0
    %391 = vmatprep.subr.bf16.mxu0 0
    %392 = vmatpush1.bf16.msra.mxu0 0
    %393 = vmatprep.mubr.bf16.mxu0 0
    %394 = vmatmul.mubr.bf16.gmra.mrb[0].mxu0 %v61
    %v395 = vpop.f32.mrb[0].mxu0
    %v396 = vadd.f32 0.0, %v395
    %v397 = vpop.f32.mrb[0].mxu0
    %v398 = vpop.f32.mrb[0].mxu0
    %v399 = vadd.f32 0.0, %v398
    %v400 = vpop.f32.mrb[0].mxu0
    %401 = vdwg.mxu0
    %v404 = vunpack.c.l.b16 %v47
    %v405 = vunpack.c.l.b16 %v48
    %v406 = vpack.c.b16 %v405, %v404
    %v408 = vsel %vm63, %v406, 0
    %410 = vmatprep.subr.bf16.mxu0 0
    %411 = vmatpush1.bf16.msra.mxu0 %v408
    %412 = vmatprep.subr.bf16.mxu0 0
    %413 = vmatpush1.bf16.msra.mxu0 0
    %414 = vmatprep.subr.bf16.mxu0 0
    %415 = vmatpush1.bf16.msra.mxu0 0
    %416 = vmatprep.subr.bf16.mxu0 0
    %417 = vmatpush1.bf16.msra.mxu0 0
    %418 = vmatprep.subr.bf16.mxu0 0
    %419 = vmatpush1.bf16.msra.mxu0 0
    %420 = vmatprep.subr.bf16.mxu0 0
    %421 = vmatpush1.bf16.msra.mxu0 0
    %422 = vmatprep.subr.bf16.mxu0 0
    %423 = vmatpush1.bf16.msra.mxu0 0
    %424 = vmatprep.subr.bf16.mxu0 0
    %425 = vmatpush1.bf16.msra.mxu0 0
    %426 = vmatprep.subr.bf16.mxu0 0
    %427 = vmatpush1.bf16.msra.mxu0 0
    %428 = vmatprep.subr.bf16.mxu0 0
    %429 = vmatpush1.bf16.msra.mxu0 0
    %430 = vmatprep.subr.bf16.mxu0 0
    %431 = vmatpush1.bf16.msra.mxu0 0
    %432 = vmatprep.subr.bf16.mxu0 0
    %433 = vmatpush1.bf16.msra.mxu0 0
    %434 = vmatprep.subr.bf16.mxu0 0
    %435 = vmatpush1.bf16.msra.mxu0 0
    %436 = vmatprep.subr.bf16.mxu0 0
    %437 = vmatpush1.bf16.msra.mxu0 0
    %438 = vmatprep.subr.bf16.mxu0 0
    %439 = vmatpush1.bf16.msra.mxu0 0
    %440 = vmatprep.subr.bf16.mxu0 0
    %441 = vmatpush1.bf16.msra.mxu0 0
    %442 = vmatprep.mubr.bf16.mxu0 0
    %443 = vmatmul.mubr.bf16.gmra.mrb[0].mxu0 %v61
    %v444 = vpop.f32.mrb[0].mxu0
    %v445 = vadd.f32 0.0, %v444
    %v446 = vpop.f32.mrb[0].mxu0
    %v447 = vpop.f32.mrb[0].mxu0
    %v448 = vadd.f32 0.0, %v447
    %v449 = vpop.f32.mrb[0].mxu0
    %450 = vdwg.mxu0
    %v451 = vld [vmem:[%s1] sm:$0xff]
    %v452 = vld [vmem:[%s1 + $0x8] sm:$0xff]
    %v453 = vld [vmem:[%s1 + $0x10] sm:$0xff]
    %v454 = vld [vmem:[%s1 + $0x18] sm:$0xff]
    %v455 = vld [vmem:[%s1 + $0x20] sm:$0xff]
    %v456 = vld [vmem:[%s1 + $0x28] sm:$0xff]
    %v457 = vld [vmem:[%s1 + $0x30] sm:$0xff]
    %v458 = vld [vmem:[%s1 + $0x38] sm:$0xff]
    %v459 = vld [vmem:[%s1 + $0x40] sm:$0xff]
    %v460 = vld [vmem:[%s1 + $0x48] sm:$0xff]
    %v461 = vld [vmem:[%s1 + $0x50] sm:$0xff]
    %v462 = vld [vmem:[%s1 + $0x58] sm:$0xff]
    %v463 = vld [vmem:[%s1 + $0x60] sm:$0xff]
    %v464 = vld [vmem:[%s1 + $0x68] sm:$0xff]
    %v465 = vld [vmem:[%s1 + $0x70] sm:$0xff]
    %v466 = vld [vmem:[%s1 + $0x78] sm:$0xff]
    %468 = vset.pattern.permute.xlu0 0
    %469 = vperm.xlu0 %468, %v451
    %v470 = vpop.permute.xlu0 %469
    %473 = vset.pattern.permute.xlu0 0
    %474 = vperm.xlu0 %473, %v452
    %v475 = vpop.permute.xlu0 %474
    %478 = vset.pattern.permute.xlu0 0
    %479 = vperm.xlu0 %478, %v453
    %v480 = vpop.permute.xlu0 %479
    %483 = vset.pattern.permute.xlu0 0
    %484 = vperm.xlu0 %483, %v454
    %v485 = vpop.permute.xlu0 %484
    %488 = vset.pattern.permute.xlu0 0
    %489 = vperm.xlu0 %488, %v455
    %v490 = vpop.permute.xlu0 %489
    %493 = vset.pattern.permute.xlu0 0
    %494 = vperm.xlu0 %493, %v456
    %v495 = vpop.permute.xlu0 %494
    %498 = vset.pattern.permute.xlu0 0
    %499 = vperm.xlu0 %498, %v457
    %v500 = vpop.permute.xlu0 %499
    %503 = vset.pattern.permute.xlu0 0
    %504 = vperm.xlu0 %503, %v458
    %v505 = vpop.permute.xlu0 %504
    %508 = vset.pattern.permute.xlu0 0
    %509 = vperm.xlu0 %508, %v459
    %v510 = vpop.permute.xlu0 %509
    %513 = vset.pattern.permute.xlu0 0
    %514 = vperm.xlu0 %513, %v460
    %v515 = vpop.permute.xlu0 %514
    %518 = vset.pattern.permute.xlu0 0
    %519 = vperm.xlu0 %518, %v461
    %v520 = vpop.permute.xlu0 %519
    %523 = vset.pattern.permute.xlu0 0
    %524 = vperm.xlu0 %523, %v462
    %v525 = vpop.permute.xlu0 %524
    %528 = vset.pattern.permute.xlu0 0
    %529 = vperm.xlu0 %528, %v463
    %v530 = vpop.permute.xlu0 %529
    %533 = vset.pattern.permute.xlu0 0
    %534 = vperm.xlu0 %533, %v464
    %v535 = vpop.permute.xlu0 %534
    %538 = vset.pattern.permute.xlu0 0
    %539 = vperm.xlu0 %538, %v465
    %v540 = vpop.permute.xlu0 %539
    %543 = vset.pattern.permute.xlu0 0
    %544 = vperm.xlu0 %543, %v466
    %v545 = vpop.permute.xlu0 %544
    %v547 = vadd.f32 %v470, %v102
    %v548 = vadd.f32 %v475, %v105
    %v549 = vadd.f32 %v480, %v151
    %v550 = vadd.f32 %v485, %v154
    %v551 = vadd.f32 %v490, %v200
    %v552 = vadd.f32 %v495, %v203
    %v553 = vadd.f32 %v500, %v249
    %v554 = vadd.f32 %v505, %v252
    %v555 = vadd.f32 %v510, %v298
    %v556 = vadd.f32 %v515, %v301
    %v557 = vadd.f32 %v520, %v347
    %v558 = vadd.f32 %v525, %v350
    %v559 = vadd.f32 %v530, %v396
    %v560 = vadd.f32 %v535, %v399
    %v561 = vadd.f32 %v540, %v445
    %v562 = vadd.f32 %v545, %v448
    %v563 = vld [vmem:[%s3] sm:$0xf]
    %v564 = vld [vmem:[%s3 + $0x4] sm:$0xf]
    %v565 = vld [vmem:[%s3 + $0x8] sm:$0xf]
    %v566 = vld [vmem:[%s3 + $0xc] sm:$0xf]
    %v567 = vld [vmem:[%s3 + $0x10] sm:$0xf]
    %v568 = vld [vmem:[%s3 + $0x14] sm:$0xf]
    %v569 = vld [vmem:[%s3 + $0x18] sm:$0xf]
    %v570 = vld [vmem:[%s3 + $0x1c] sm:$0xf]
    %v571 = vld [vmem:[%s3 + $0x20] sm:$0xf]
    %v572 = vld [vmem:[%s3 + $0x24] sm:$0xf]
    %v573 = vld [vmem:[%s3 + $0x28] sm:$0xf]
    %v574 = vld [vmem:[%s3 + $0x2c] sm:$0xf]
    %v575 = vld [vmem:[%s3 + $0x30] sm:$0xf]
    %v576 = vld [vmem:[%s3 + $0x34] sm:$0xf]
    %v577 = vld [vmem:[%s3 + $0x38] sm:$0xf]
    %v578 = vld [vmem:[%s3 + $0x3c] sm:$0xf]
    %v579 = vunpack.c.l.bf16 %v563
    %v580 = vunpack.c.l.bf16 %v564
    %v581 = vunpack.c.l.bf16 %v565
    %v582 = vunpack.c.l.bf16 %v566
    %v583 = vunpack.c.l.bf16 %v567
    %v584 = vunpack.c.l.bf16 %v568
    %v585 = vunpack.c.l.bf16 %v569
    %v586 = vunpack.c.l.bf16 %v570
    %v587 = vunpack.c.l.bf16 %v571
    %v588 = vunpack.c.l.bf16 %v572
    %v589 = vunpack.c.l.bf16 %v573
    %v590 = vunpack.c.l.bf16 %v574
    %v591 = vunpack.c.l.bf16 %v575
    %v592 = vunpack.c.l.bf16 %v576
    %v593 = vunpack.c.l.bf16 %v577
    %v594 = vunpack.c.l.bf16 %v578
    %v595 = vadd.f32 %v547, %v579
    %v596 = vadd.f32 %v548, %v580
    %v597 = vadd.f32 %v549, %v581
    %v598 = vadd.f32 %v550, %v582
    %v599 = vadd.f32 %v551, %v583
    %v600 = vadd.f32 %v552, %v584
    %v601 = vadd.f32 %v553, %v585
    %v602 = vadd.f32 %v554, %v586
    %v603 = vadd.f32 %v555, %v587
    %v604 = vadd.f32 %v556, %v588
    %v605 = vadd.f32 %v557, %v589
    %v606 = vadd.f32 %v558, %v590
    %v607 = vadd.f32 %v559, %v591
    %v608 = vadd.f32 %v560, %v592
    %v609 = vadd.f32 %v561, %v593
    %v610 = vadd.f32 %v562, %v594
    %v611 = vtanh.pop %v595
    %v612 = vtanh.pop %v596
    %v613 = vtanh.pop %v597
    %v614 = vtanh.pop %v598
    %v615 = vtanh.pop %v599
    %v616 = vtanh.pop %v600
    %v617 = vtanh.pop %v601
    %v618 = vtanh.pop %v602
    %v619 = vtanh.pop %v603
    %v620 = vtanh.pop %v604
    %v621 = vtanh.pop %v605
    %v622 = vtanh.pop %v606
    %v623 = vtanh.pop %v607
    %v624 = vtanh.pop %v608
    %v625 = vtanh.pop %v609
    %v626 = vtanh.pop %v610
    %v627 = vld [vmem:[%s6] sm:$0xff]
    %v628 = vld [vmem:[%s6 + $0x8] sm:$0xff]
    %630 = vset.pattern.permute.xlu0 0
    %631 = vperm.xlu0 %630, %v627
    %v632 = vpop.permute.xlu0 %631
    %635 = vset.pattern.permute.xlu0 0
    %636 = vperm.xlu0 %635, %v628
    %v637 = vpop.permute.xlu0 %636
    %v639 = vmul.f32 %v611, %v632
    %v640 = vmul.f32 %v612, %v637
    %v641 = vmul.f32 %v613, %v632
    %v642 = vmul.f32 %v614, %v637
    %v643 = vmul.f32 %v615, %v632
    %v644 = vmul.f32 %v616, %v637
    %v645 = vmul.f32 %v617, %v632
    %v646 = vmul.f32 %v618, %v637
    %v647 = vmul.f32 %v619, %v632
    %v648 = vmul.f32 %v620, %v637
    %v649 = vmul.f32 %v621, %v632
    %v650 = vmul.f32 %v622, %v637
    %v651 = vmul.f32 %v623, %v632
    %v652 = vmul.f32 %v624, %v637
    %v653 = vmul.f32 %v625, %v632
    %v654 = vmul.f32 %v626, %v637
    %v655 = vadd.f32 %v639, %v640
    %v656 = vrot.slane %v655, 4
    %v657 = vadd.f32 %v655, %v656
    %v658 = vrot.slane %v657, 2
    %v659 = vadd.f32 %v657, %v658
    %v660 = vrot.slane %v659, 1
    %v661 = vadd.f32 %v659, %v660
    %v662 = vadd.f32 %v641, %v642
    %v663 = vrot.slane %v662, 4
    %v664 = vadd.f32 %v662, %v663
    %v665 = vrot.slane %v664, 2
    %v666 = vadd.f32 %v664, %v665
    %v667 = vrot.slane %v666, 1
    %v668 = vadd.f32 %v666, %v667
    %v669 = vadd.f32 %v643, %v644
    %v670 = vrot.slane %v669, 4
    %v671 = vadd.f32 %v669, %v670
    %v672 = vrot.slane %v671, 2
    %v673 = vadd.f32 %v671, %v672
    %v674 = vrot.slane %v673, 1
    %v675 = vadd.f32 %v673, %v674
    %v676 = vadd.f32 %v645, %v646
    %v677 = vrot.slane %v676, 4
    %v678 = vadd.f32 %v676, %v677
    %v679 = vrot.slane %v678, 2
    %v680 = vadd.f32 %v678, %v679
    %v681 = vrot.slane %v680, 1
    %v682 = vadd.f32 %v680, %v681
    %v683 = vadd.f32 %v647, %v648
    %v684 = vrot.slane %v683, 4
    %v685 = vadd.f32 %v683, %v684
    %v686 = vrot.slane %v685, 2
    %v687 = vadd.f32 %v685, %v686
    %v688 = vrot.slane %v687, 1
    %v689 = vadd.f32 %v687, %v688
    %v690 = vadd.f32 %v649, %v650
    %v691 = vrot.slane %v690, 4
    %v692 = vadd.f32 %v690, %v691
    %v693 = vrot.slane %v692, 2
    %v694 = vadd.f32 %v692, %v693
    %v695 = vrot.slane %v694, 1
    %v696 = vadd.f32 %v694, %v695
    %v697 = vadd.f32 %v651, %v652
    %v698 = vrot.slane %v697, 4
    %v699 = vadd.f32 %v697, %v698
    %v700 = vrot.slane %v699, 2
    %v701 = vadd.f32 %v699, %v700
    %v702 = vrot.slane %v701, 1
    %v703 = vadd.f32 %v701, %v702
    %v704 = vadd.f32 %v653, %v654
    %v705 = vrot.slane %v704, 4
    %v706 = vadd.f32 %v704, %v705
    %v707 = vrot.slane %v706, 2
    %v708 = vadd.f32 %v706, %v707
    %v709 = vrot.slane %v708, 1
    %v710 = vadd.f32 %v708, %v709
    %v711 = vlaneseq
    %v712 = vand.u32 %v711, 127
    %v713 = vld [vmem:[%s0] sm:$0xff]
    %714 = vset.pattern.permute.xlu0 0
    %715 = vperm.xlu0 %714, %v713
    %v716 = vpop.permute.xlu0 %715
    %vm717 = vcmp.lt.s32.totalorder %v712, %v716
    %vm726 = vcmask 1041409
    %v727 = vsel %vm726, %v668, %v661
    %vm728 = vcmask 1042434
    %v729 = vsel %vm728, %v675, %v727
    %vm730 = vcmask 1043459
    %v731 = vsel %vm730, %v682, %v729
    %vm732 = vcmask 1044484
    %v733 = vsel %vm732, %v689, %v731
    %vm734 = vcmask 1045509
    %v735 = vsel %vm734, %v696, %v733
    %vm736 = vcmask 1046534
    %v737 = vsel %vm736, %v703, %v735
    %vm738 = vcmask 1047559
    %v739 = vsel %vm738, %v710, %v737
    %v741 = vsel %vm717, %v739, -1e+30
    %742 = vmax.xlane.f32.xlu0 %v741
    %v743 = vpop.xlane.xlu0 %742
    %v744 = vsub.f32 %v741, %v743
    %v745 = vmul.f32 %v744, 1.442695
    %v746 = vpow.pop %v745
    %747 = vadd.xlane.f32.xlu0 %v746
    %v748 = vpop.xlane.xlu0 %747
    %v749 = vrcp.pop %v748
    %v750 = vmul.f32 %v746, %v749
    %751 = vst [vmem:[#allocation4] sm:$0xff] %v750
    %v753 = vcombine.high %v750, %v750
    %v755 = vunpack.c.l.s4 1966171168
    %v756 = vunpack.c.0.s8 %v755
    %v757 = vlaneseq
    %v758 = vshrl.u32 %v757, 7
    %v759 = vsub.s32 %v756, %v758
    %v760 = vrot.slane %v750, %v759
    %v762 = vunpack.c.l.s4 1966171168
    %v763 = vunpack.c.0.s8 %v762
    %v764 = vlaneseq
    %v765 = vshrl.u32 %v764, 7
    %v766 = vsub.s32 %v763, %v765
    %v767 = vrot.slane %v753, %v766
    %v768 = vcombine.high %v760, %v760
    %v769 = vcombine.high %v767, %v767
    %v771 = vunpack.c.l.s4 1966171168
    %v772 = vunpack.c.0.s8 %v771
    %v773 = vlaneseq
    %v774 = vshrl.u32 %v773, 7
    %v775 = vsub.s32 %v772, %v774
    %v776 = vrot.slane %v760, %v775
    %v778 = vunpack.c.l.s4 1966171168
    %v779 = vunpack.c.0.s8 %v778
    %v780 = vlaneseq
    %v781 = vshrl.u32 %v780, 7
    %v782 = vsub.s32 %v779, %v781
    %v783 = vrot.slane %v767, %v782
    %v785 = vunpack.c.l.s4 1966171168
    %v786 = vunpack.c.0.s8 %v785
    %v787 = vlaneseq
    %v788 = vshrl.u32 %v787, 7
    %v789 = vsub.s32 %v786, %v788
    %v790 = vrot.slane %v768, %v789
    %v792 = vunpack.c.l.s4 1966171168
    %v793 = vunpack.c.0.s8 %v792
    %v794 = vlaneseq
    %v795 = vshrl.u32 %v794, 7
    %v796 = vsub.s32 %v793, %v795
    %v797 = vrot.slane %v769, %v796
    %v798 = vcombine.high %v776, %v776
    %v799 = vcombine.high %v783, %v783
    %v800 = vcombine.high %v790, %v790
    %v801 = vcombine.high %v797, %v797
    %v810 = vpack.c.bf16 %v776, %v776
    %v811 = vpack.c.bf16 %v790, %v790
    %v812 = vpack.c.bf16 %v798, %v798
    %v813 = vpack.c.bf16 %v800, %v800
    %v814 = vpack.c.bf16 %v783, %v783
    %v815 = vpack.c.bf16 %v797, %v797
    %v816 = vpack.c.bf16 %v799, %v799
    %v817 = vpack.c.bf16 %v801, %v801
    %v818 = vld [vmem:[%s2] sm:$0xf]
    %v819 = vld [vmem:[%s2 + $0x4] sm:$0xf]
    %v820 = vld [vmem:[%s2 + $0x8] sm:$0xf]
    %v821 = vld [vmem:[%s2 + $0xc] sm:$0xf]
    %v822 = vld [vmem:[%s2 + $0x10] sm:$0xf]
    %v823 = vld [vmem:[%s2 + $0x14] sm:$0xf]
    %v824 = vld [vmem:[%s2 + $0x18] sm:$0xf]
    %v825 = vld [vmem:[%s2 + $0x1c] sm:$0xf]
    %v826 = vld [vmem:[%s2 + $0x20] sm:$0xf]
    %v827 = vld [vmem:[%s2 + $0x24] sm:$0xf]
    %v828 = vld [vmem:[%s2 + $0x28] sm:$0xf]
    %v829 = vld [vmem:[%s2 + $0x2c] sm:$0xf]
    %v830 = vld [vmem:[%s2 + $0x30] sm:$0xf]
    %v831 = vld [vmem:[%s2 + $0x34] sm:$0xf]
    %v832 = vld [vmem:[%s2 + $0x38] sm:$0xf]
    %v833 = vld [vmem:[%s2 + $0x3c] sm:$0xf]
    %v834 = vld [vmem:[%s2 + $0x40] sm:$0xf]
    %v835 = vld [vmem:[%s2 + $0x44] sm:$0xf]
    %v836 = vld [vmem:[%s2 + $0x48] sm:$0xf]
    %v837 = vld [vmem:[%s2 + $0x4c] sm:$0xf]
    %v838 = vld [vmem:[%s2 + $0x50] sm:$0xf]
    %v839 = vld [vmem:[%s2 + $0x54] sm:$0xf]
    %v840 = vld [vmem:[%s2 + $0x58] sm:$0xf]
    %v841 = vld [vmem:[%s2 + $0x5c] sm:$0xf]
    %v842 = vld [vmem:[%s2 + $0x60] sm:$0xf]
    %v843 = vld [vmem:[%s2 + $0x64] sm:$0xf]
    %v844 = vld [vmem:[%s2 + $0x68] sm:$0xf]
    %v845 = vld [vmem:[%s2 + $0x6c] sm:$0xf]
    %v846 = vld [vmem:[%s2 + $0x70] sm:$0xf]
    %v847 = vld [vmem:[%s2 + $0x74] sm:$0xf]
    %v848 = vld [vmem:[%s2 + $0x78] sm:$0xf]
    %v849 = vld [vmem:[%s2 + $0x7c] sm:$0xf]
    %v850 = vld [vmem:[%s2 + $0x80] sm:$0xf]
    %v851 = vld [vmem:[%s2 + $0x84] sm:$0xf]
    %v852 = vld [vmem:[%s2 + $0x88] sm:$0xf]
    %v853 = vld [vmem:[%s2 + $0x8c] sm:$0xf]
    %v854 = vld [vmem:[%s2 + $0x90] sm:$0xf]
    %v855 = vld [vmem:[%s2 + $0x94] sm:$0xf]
    %v856 = vld [vmem:[%s2 + $0x98] sm:$0xf]
    %v857 = vld [vmem:[%s2 + $0x9c] sm:$0xf]
    %v858 = vld [vmem:[%s2 + $0xa0] sm:$0xf]
    %v859 = vld [vmem:[%s2 + $0xa4] sm:$0xf]
    %v860 = vld [vmem:[%s2 + $0xa8] sm:$0xf]
    %v861 = vld [vmem:[%s2 + $0xac] sm:$0xf]
    %v862 = vld [vmem:[%s2 + $0xb0] sm:$0xf]
    %v863 = vld [vmem:[%s2 + $0xb4] sm:$0xf]
    %v864 = vld [vmem:[%s2 + $0xb8] sm:$0xf]
    %v865 = vld [vmem:[%s2 + $0xbc] sm:$0xf]
    %v866 = vld [vmem:[%s2 + $0xc0] sm:$0xf]
    %v867 = vld [vmem:[%s2 + $0xc4] sm:$0xf]
    %v868 = vld [vmem:[%s2 + $0xc8] sm:$0xf]
    %v869 = vld [vmem:[%s2 + $0xcc] sm:$0xf]
    %v870 = vld [vmem:[%s2 + $0xd0] sm:$0xf]
    %v871 = vld [vmem:[%s2 + $0xd4] sm:$0xf]
    %v872 = vld [vmem:[%s2 + $0xd8] sm:$0xf]
    %v873 = vld [vmem:[%s2 + $0xdc] sm:$0xf]
    %v874 = vld [vmem:[%s2 + $0xe0] sm:$0xf]
    %v875 = vld [vmem:[%s2 + $0xe4] sm:$0xf]
    %v876 = vld [vmem:[%s2 + $0xe8] sm:$0xf]
    %v877 = vld [vmem:[%s2 + $0xec] sm:$0xf]
    %v878 = vld [vmem:[%s2 + $0xf0] sm:$0xf]
    %v879 = vld [vmem:[%s2 + $0xf4] sm:$0xf]
    %v880 = vld [vmem:[%s2 + $0xf8] sm:$0xf]
    %v881 = vld [vmem:[%s2 + $0xfc] sm:$0xf]
    %v882 = vld [vmem:[%s2 + $0x100] sm:$0xf]
    %v883 = vld [vmem:[%s2 + $0x104] sm:$0xf]
    %v884 = vld [vmem:[%s2 + $0x108] sm:$0xf]
    %v885 = vld [vmem:[%s2 + $0x10c] sm:$0xf]
    %v886 = vld [vmem:[%s2 + $0x110] sm:$0xf]
    %v887 = vld [vmem:[%s2 + $0x114] sm:$0xf]
    %v888 = vld [vmem:[%s2 + $0x118] sm:$0xf]
    %v889 = vld [vmem:[%s2 + $0x11c] sm:$0xf]
    %v890 = vld [vmem:[%s2 + $0x120] sm:$0xf]
    %v891 = vld [vmem:[%s2 + $0x124] sm:$0xf]
    %v892 = vld [vmem:[%s2 + $0x128] sm:$0xf]
    %v893 = vld [vmem:[%s2 + $0x12c] sm:$0xf]
    %v894 = vld [vmem:[%s2 + $0x130] sm:$0xf]
    %v895 = vld [vmem:[%s2 + $0x134] sm:$0xf]
    %v896 = vld [vmem:[%s2 + $0x138] sm:$0xf]
    %v897 = vld [vmem:[%s2 + $0x13c] sm:$0xf]
    %v898 = vld [vmem:[%s2 + $0x140] sm:$0xf]
    %v899 = vld [vmem:[%s2 + $0x144] sm:$0xf]
    %v900 = vld [vmem:[%s2 + $0x148] sm:$0xf]
    %v901 = vld [vmem:[%s2 + $0x14c] sm:$0xf]
    %v902 = vld [vmem:[%s2 + $0x150] sm:$0xf]
    %v903 = vld [vmem:[%s2 + $0x154] sm:$0xf]
    %v904 = vld [vmem:[%s2 + $0x158] sm:$0xf]
    %v905 = vld [vmem:[%s2 + $0x15c] sm:$0xf]
    %v906 = vld [vmem:[%s2 + $0x160] sm:$0xf]
    %v907 = vld [vmem:[%s2 + $0x164] sm:$0xf]
    %v908 = vld [vmem:[%s2 + $0x168] sm:$0xf]
    %v909 = vld [vmem:[%s2 + $0x16c] sm:$0xf]
    %v910 = vld [vmem:[%s2 + $0x170] sm:$0xf]
    %v911 = vld [vmem:[%s2 + $0x174] sm:$0xf]
    %v912 = vld [vmem:[%s2 + $0x178] sm:$0xf]
    %v913 = vld [vmem:[%s2 + $0x17c] sm:$0xf]
    %v914 = vld [vmem:[%s2 + $0x180] sm:$0xf]
    %v915 = vld [vmem:[%s2 + $0x184] sm:$0xf]
    %v916 = vld [vmem:[%s2 + $0x188] sm:$0xf]
    %v917 = vld [vmem:[%s2 + $0x18c] sm:$0xf]
    %v918 = vld [vmem:[%s2 + $0x190] sm:$0xf]
    %v919 = vld [vmem:[%s2 + $0x194] sm:$0xf]
    %v920 = vld [vmem:[%s2 + $0x198] sm:$0xf]
    %v921 = vld [vmem:[%s2 + $0x19c] sm:$0xf]
    %v922 = vld [vmem:[%s2 + $0x1a0] sm:$0xf]
    %v923 = vld [vmem:[%s2 + $0x1a4] sm:$0xf]
    %v924 = vld [vmem:[%s2 + $0x1a8] sm:$0xf]
    %v925 = vld [vmem:[%s2 + $0x1ac] sm:$0xf]
    %v926 = vld [vmem:[%s2 + $0x1b0] sm:$0xf]
    %v927 = vld [vmem:[%s2 + $0x1b4] sm:$0xf]
    %v928 = vld [vmem:[%s2 + $0x1b8] sm:$0xf]
    %v929 = vld [vmem:[%s2 + $0x1bc] sm:$0xf]
    %v930 = vld [vmem:[%s2 + $0x1c0] sm:$0xf]
    %v931 = vld [vmem:[%s2 + $0x1c4] sm:$0xf]
    %v932 = vld [vmem:[%s2 + $0x1c8] sm:$0xf]
    %v933 = vld [vmem:[%s2 + $0x1cc] sm:$0xf]
    %v934 = vld [vmem:[%s2 + $0x1d0] sm:$0xf]
    %v935 = vld [vmem:[%s2 + $0x1d4] sm:$0xf]
    %v936 = vld [vmem:[%s2 + $0x1d8] sm:$0xf]
    %v937 = vld [vmem:[%s2 + $0x1dc] sm:$0xf]
    %v938 = vld [vmem:[%s2 + $0x1e0] sm:$0xf]
    %v939 = vld [vmem:[%s2 + $0x1e4] sm:$0xf]
    %v940 = vld [vmem:[%s2 + $0x1e8] sm:$0xf]
    %v941 = vld [vmem:[%s2 + $0x1ec] sm:$0xf]
    %v942 = vld [vmem:[%s2 + $0x1f0] sm:$0xf]
    %v943 = vld [vmem:[%s2 + $0x1f4] sm:$0xf]
    %v944 = vld [vmem:[%s2 + $0x1f8] sm:$0xf]
    %v945 = vld [vmem:[%s2 + $0x1fc] sm:$0xf]
    %v962 = vunpack.c.l.b16 %v818
    %v963 = vunpack.c.l.b16 %v819
    %v964 = vunpack.c.l.b16 %v820
    %v965 = vunpack.c.l.b16 %v821
    %v966 = vunpack.c.l.b16 %v822
    %v967 = vunpack.c.l.b16 %v823
    %v968 = vunpack.c.l.b16 %v824
    %v969 = vunpack.c.l.b16 %v825
    %v970 = vunpack.c.l.b16 %v826
    %v971 = vunpack.c.l.b16 %v827
    %v972 = vunpack.c.l.b16 %v828
    %v973 = vunpack.c.l.b16 %v829
    %v974 = vunpack.c.l.b16 %v830
    %v975 = vunpack.c.l.b16 %v831
    %v976 = vunpack.c.l.b16 %v832
    %v977 = vunpack.c.l.b16 %v833
    %v978 = vpack.c.b16 %v963, %v962
    %v979 = vpack.c.b16 %v965, %v964
    %v980 = vpack.c.b16 %v967, %v966
    %v981 = vpack.c.b16 %v969, %v968
    %v982 = vpack.c.b16 %v971, %v970
    %v983 = vpack.c.b16 %v973, %v972
    %v984 = vpack.c.b16 %v975, %v974
    %v985 = vpack.c.b16 %v977, %v976
    %994 = vmatprep.subr.bf16.mxu0 0
    %995 = vmatpush1.bf16.msra.mxu0 %v978
    %996 = vmatprep.subr.bf16.mxu0 0
    %997 = vmatpush1.bf16.msra.mxu0 %v979
    %998 = vmatprep.subr.bf16.mxu0 0
    %999 = vmatpush1.bf16.msra.mxu0 %v980
    %1000 = vmatprep.subr.bf16.mxu0 0
    %1001 = vmatpush1.bf16.msra.mxu0 %v981
    %1002 = vmatprep.subr.bf16.mxu0 0
    %1003 = vmatpush1.bf16.msra.mxu0 %v982
    %1004 = vmatprep.subr.bf16.mxu0 0
    %1005 = vmatpush1.bf16.msra.mxu0 %v983
    %1006 = vmatprep.subr.bf16.mxu0 0
    %1007 = vmatpush1.bf16.msra.mxu0 %v984
    %1008 = vmatprep.subr.bf16.mxu0 0
    %1009 = vmatpush1.bf16.msra.mxu0 %v985
    %1010 = vmatprep.subr.bf16.mxu0 0
    %1011 = vmatpush1.bf16.msra.mxu0 0
    %1012 = vmatprep.subr.bf16.mxu0 0
    %1013 = vmatpush1.bf16.msra.mxu0 0
    %1014 = vmatprep.subr.bf16.mxu0 0
    %1015 = vmatpush1.bf16.msra.mxu0 0
    %1016 = vmatprep.subr.bf16.mxu0 0
    %1017 = vmatpush1.bf16.msra.mxu0 0
    %1018 = vmatprep.subr.bf16.mxu0 0
    %1019 = vmatpush1.bf16.msra.mxu0 0
    %1020 = vmatprep.subr.bf16.mxu0 0
    %1021 = vmatpush1.bf16.msra.mxu0 0
    %1022 = vmatprep.subr.bf16.mxu0 0
    %1023 = vmatpush1.bf16.msra.mxu0 0
    %1024 = vmatprep.subr.bf16.mxu0 0
    %1025 = vmatpush1.bf16.msra.mxu0 0
    %1026 = vmatprep.mubr.bf16.mxu0 0
    %1027 = vmatmul.mubr.bf16.gmra.mrb[0].mxu0 %v810
    %v1028 = vpop.f32.mrb[0].mxu0
    %v1029 = vadd.f32 0.0, %v1028
    %v1030 = vpop.f32.mrb[0].mxu0
    %v1031 = vpop.f32.mrb[0].mxu0
    %v1032 = vpop.f32.mrb[0].mxu0
    %1033 = vdwg.mxu0
    %v1050 = vunpack.c.l.b16 %v834
    %v1051 = vunpack.c.l.b16 %v835
    %v1052 = vunpack.c.l.b16 %v836
    %v1053 = vunpack.c.l.b16 %v837
    %v1054 = vunpack.c.l.b16 %v838
    %v1055 = vunpack.c.l.b16 %v839
    %v1056 = vunpack.c.l.b16 %v840
    %v1057 = vunpack.c.l.b16 %v841
    %v1058 = vunpack.c.l.b16 %v842
    %v1059 = vunpack.c.l.b16 %v843
    %v1060 = vunpack.c.l.b16 %v844
    %v1061 = vunpack.c.l.b16 %v845
    %v1062 = vunpack.c.l.b16 %v846
    %v1063 = vunpack.c.l.b16 %v847
    %v1064 = vunpack.c.l.b16 %v848
    %v1065 = vunpack.c.l.b16 %v849
    %v1066 = vpack.c.b16 %v1051, %v1050
    %v1067 = vpack.c.b16 %v1053, %v1052
    %v1068 = vpack.c.b16 %v1055, %v1054
    %v1069 = vpack.c.b16 %v1057, %v1056
    %v1070 = vpack.c.b16 %v1059, %v1058
    %v1071 = vpack.c.b16 %v1061, %v1060
    %v1072 = vpack.c.b16 %v1063, %v1062
    %v1073 = vpack.c.b16 %v1065, %v1064
    %1082 = vmatprep.subr.bf16.mxu0 0
    %1083 = vmatpush1.bf16.msra.mxu0 %v1066
    %1084 = vmatprep.subr.bf16.mxu0 0
    %1085 = vmatpush1.bf16.msra.mxu0 %v1067
    %1086 = vmatprep.subr.bf16.mxu0 0
    %1087 = vmatpush1.bf16.msra.mxu0 %v1068
    %1088 = vmatprep.subr.bf16.mxu0 0
    %1089 = vmatpush1.bf16.msra.mxu0 %v1069
    %1090 = vmatprep.subr.bf16.mxu0 0
    %1091 = vmatpush1.bf16.msra.mxu0 %v1070
    %1092 = vmatprep.subr.bf16.mxu0 0
    %1093 = vmatpush1.bf16.msra.mxu0 %v1071
    %1094 = vmatprep.subr.bf16.mxu0 0
    %1095 = vmatpush1.bf16.msra.mxu0 %v1072
    %1096 = vmatprep.subr.bf16.mxu0 0
    %1097 = vmatpush1.bf16.msra.mxu0 %v1073
    %1098 = vmatprep.subr.bf16.mxu0 0
    %1099 = vmatpush1.bf16.msra.mxu0 0
    %1100 = vmatprep.subr.bf16.mxu0 0
    %1101 = vmatpush1.bf16.msra.mxu0 0
    %1102 = vmatprep.subr.bf16.mxu0 0
    %1103 = vmatpush1.bf16.msra.mxu0 0
    %1104 = vmatprep.subr.bf16.mxu0 0
    %1105 = vmatpush1.bf16.msra.mxu0 0
    %1106 = vmatprep.subr.bf16.mxu0 0
    %1107 = vmatpush1.bf16.msra.mxu0 0
    %1108 = vmatprep.subr.bf16.mxu0 0
    %1109 = vmatpush1.bf16.msra.mxu0 0
    %1110 = vmatprep.subr.bf16.mxu0 0
    %1111 = vmatpush1.bf16.msra.mxu0 0
    %1112 = vmatprep.subr.bf16.mxu0 0
    %1113 = vmatpush1.bf16.msra.mxu0 0
    %1114 = vmatprep.mubr.bf16.mxu0 0
    %1115 = vmatmul.mubr.bf16.gmra.mrb[0].mxu0 %v811
    %v1116 = vpop.f32.mrb[0].mxu0
    %v1117 = vadd.f32 0.0, %v1116
    %v1118 = vpop.f32.mrb[0].mxu0
    %v1119 = vpop.f32.mrb[0].mxu0
    %v1120 = vpop.f32.mrb[0].mxu0
    %1121 = vdwg.mxu0
    %v1138 = vunpack.c.l.b16 %v850
    %v1139 = vunpack.c.l.b16 %v851
    %v1140 = vunpack.c.l.b16 %v852
    %v1141 = vunpack.c.l.b16 %v853
    %v1142 = vunpack.c.l.b16 %v854
    %v1143 = vunpack.c.l.b16 %v855
    %v1144 = vunpack.c.l.b16 %v856
    %v1145 = vunpack.c.l.b16 %v857
    %v1146 = vunpack.c.l.b16 %v858
    %v1147 = vunpack.c.l.b16 %v859
    %v1148 = vunpack.c.l.b16 %v860
    %v1149 = vunpack.c.l.b16 %v861
    %v1150 = vunpack.c.l.b16 %v862
    %v1151 = vunpack.c.l.b16 %v863
    %v1152 = vunpack.c.l.b16 %v864
    %v1153 = vunpack.c.l.b16 %v865
    %v1154 = vpack.c.b16 %v1139, %v1138
    %v1155 = vpack.c.b16 %v1141, %v1140
    %v1156 = vpack.c.b16 %v1143, %v1142
    %v1157 = vpack.c.b16 %v1145, %v1144
    %v1158 = vpack.c.b16 %v1147, %v1146
    %v1159 = vpack.c.b16 %v1149, %v1148
    %v1160 = vpack.c.b16 %v1151, %v1150
    %v1161 = vpack.c.b16 %v1153, %v1152
    %1170 = vmatprep.subr.bf16.mxu0 0
    %1171 = vmatpush1.bf16.msra.mxu0 %v1154
    %1172 = vmatprep.subr.bf16.mxu0 0
    %1173 = vmatpush1.bf16.msra.mxu0 %v1155
    %1174 = vmatprep.subr.bf16.mxu0 0
    %1175 = vmatpush1.bf16.msra.mxu0 %v1156
    %1176 = vmatprep.subr.bf16.mxu0 0
    %1177 = vmatpush1.bf16.msra.mxu0 %v1157
    %1178 = vmatprep.subr.bf16.mxu0 0
    %1179 = vmatpush1.bf16.msra.mxu0 %v1158
    %1180 = vmatprep.subr.bf16.mxu0 0
    %1181 = vmatpush1.bf16.msra.mxu0 %v1159
    %1182 = vmatprep.subr.bf16.mxu0 0
    %1183 = vmatpush1.bf16.msra.mxu0 %v1160
    %1184 = vmatprep.subr.bf16.mxu0 0
    %1185 = vmatpush1.bf16.msra.mxu0 %v1161
    %1186 = vmatprep.subr.bf16.mxu0 0
    %1187 = vmatpush1.bf16.msra.mxu0 0
    %1188 = vmatprep.subr.bf16.mxu0 0
    %1189 = vmatpush1.bf16.msra.mxu0 0
    %1190 = vmatprep.subr.bf16.mxu0 0
    %1191 = vmatpush1.bf16.msra.mxu0 0
    %1192 = vmatprep.subr.bf16.mxu0 0
    %1193 = vmatpush1.bf16.msra.mxu0 0
    %1194 = vmatprep.subr.bf16.mxu0 0
    %1195 = vmatpush1.bf16.msra.mxu0 0
    %1196 = vmatprep.subr.bf16.mxu0 0
    %1197 = vmatpush1.bf16.msra.mxu0 0
    %1198 = vmatprep.subr.bf16.mxu0 0
    %1199 = vmatpush1.bf16.msra.mxu0 0
    %1200 = vmatprep.subr.bf16.mxu0 0
    %1201 = vmatpush1.bf16.msra.mxu0 0
    %1202 = vmatprep.mubr.bf16.mxu0 0
    %1203 = vmatmul.mubr.bf16.gmra.mrb[0].mxu0 %v812
    %v1204 = vpop.f32.mrb[0].mxu0
    %v1205 = vadd.f32 0.0, %v1204
    %v1206 = vpop.f32.mrb[0].mxu0
    %v1207 = vpop.f32.mrb[0].mxu0
    %v1208 = vpop.f32.mrb[0].mxu0
    %1209 = vdwg.mxu0
    %v1226 = vunpack.c.l.b16 %v866
    %v1227 = vunpack.c.l.b16 %v867
    %v1228 = vunpack.c.l.b16 %v868
    %v1229 = vunpack.c.l.b16 %v869
    %v1230 = vunpack.c.l.b16 %v870
    %v1231 = vunpack.c.l.b16 %v871
    %v1232 = vunpack.c.l.b16 %v872
    %v1233 = vunpack.c.l.b16 %v873
    %v1234 = vunpack.c.l.b16 %v874
    %v1235 = vunpack.c.l.b16 %v875
    %v1236 = vunpack.c.l.b16 %v876
    %v1237 = vunpack.c.l.b16 %v877
    %v1238 = vunpack.c.l.b16 %v878
    %v1239 = vunpack.c.l.b16 %v879
    %v1240 = vunpack.c.l.b16 %v880
    %v1241 = vunpack.c.l.b16 %v881
    %v1242 = vpack.c.b16 %v1227, %v1226
    %v1243 = vpack.c.b16 %v1229, %v1228
    %v1244 = vpack.c.b16 %v1231, %v1230
    %v1245 = vpack.c.b16 %v1233, %v1232
    %v1246 = vpack.c.b16 %v1235, %v1234
    %v1247 = vpack.c.b16 %v1237, %v1236
    %v1248 = vpack.c.b16 %v1239, %v1238
    %v1249 = vpack.c.b16 %v1241, %v1240
    %1258 = vmatprep.subr.bf16.mxu0 0
    %1259 = vmatpush1.bf16.msra.mxu0 %v1242
    %1260 = vmatprep.subr.bf16.mxu0 0
    %1261 = vmatpush1.bf16.msra.mxu0 %v1243
    %1262 = vmatprep.subr.bf16.mxu0 0
    %1263 = vmatpush1.bf16.msra.mxu0 %v1244
    %1264 = vmatprep.subr.bf16.mxu0 0
    %1265 = vmatpush1.bf16.msra.mxu0 %v1245
    %1266 = vmatprep.subr.bf16.mxu0 0
    %1267 = vmatpush1.bf16.msra.mxu0 %v1246
    %1268 = vmatprep.subr.bf16.mxu0 0
    %1269 = vmatpush1.bf16.msra.mxu0 %v1247
    %1270 = vmatprep.subr.bf16.mxu0 0
    %1271 = vmatpush1.bf16.msra.mxu0 %v1248
    %1272 = vmatprep.subr.bf16.mxu0 0
    %1273 = vmatpush1.bf16.msra.mxu0 %v1249
    %1274 = vmatprep.subr.bf16.mxu0 0
    %1275 = vmatpush1.bf16.msra.mxu0 0
    %1276 = vmatprep.subr.bf16.mxu0 0
    %1277 = vmatpush1.bf16.msra.mxu0 0
    %1278 = vmatprep.subr.bf16.mxu0 0
    %1279 = vmatpush1.bf16.msra.mxu0 0
    %1280 = vmatprep.subr.bf16.mxu0 0
    %1281 = vmatpush1.bf16.msra.mxu0 0
    %1282 = vmatprep.subr.bf16.mxu0 0
    %1283 = vmatpush1.bf16.msra.mxu0 0
    %1284 = vmatprep.subr.bf16.mxu0 0
    %1285 = vmatpush1.bf16.msra.mxu0 0
    %1286 = vmatprep.subr.bf16.mxu0 0
    %1287 = vmatpush1.bf16.msra.mxu0 0
    %1288 = vmatprep.subr.bf16.mxu0 0
    %1289 = vmatpush1.bf16.msra.mxu0 0
    %1290 = vmatprep.mubr.bf16.mxu0 0
    %1291 = vmatmul.mubr.bf16.gmra.mrb[0].mxu0 %v813
    %v1292 = vpop.f32.mrb[0].mxu0
    %v1293 = vadd.f32 0.0, %v1292
    %v1294 = vpop.f32.mrb[0].mxu0
    %v1295 = vpop.f32.mrb[0].mxu0
    %v1296 = vpop.f32.mrb[0].mxu0
    %1297 = vdwg.mxu0
    %v1314 = vunpack.c.l.b16 %v882
    %v1315 = vunpack.c.l.b16 %v883
    %v1316 = vunpack.c.l.b16 %v884
    %v1317 = vunpack.c.l.b16 %v885
    %v1318 = vunpack.c.l.b16 %v886
    %v1319 = vunpack.c.l.b16 %v887
    %v1320 = vunpack.c.l.b16 %v888
    %v1321 = vunpack.c.l.b16 %v889
    %v1322 = vunpack.c.l.b16 %v890
    %v1323 = vunpack.c.l.b16 %v891
    %v1324 = vunpack.c.l.b16 %v892
    %v1325 = vunpack.c.l.b16 %v893
    %v1326 = vunpack.c.l.b16 %v894
    %v1327 = vunpack.c.l.b16 %v895
    %v1328 = vunpack.c.l.b16 %v896
    %v1329 = vunpack.c.l.b16 %v897
    %v1330 = vpack.c.b16 %v1315, %v1314
    %v1331 = vpack.c.b16 %v1317, %v1316
    %v1332 = vpack.c.b16 %v1319, %v1318
    %v1333 = vpack.c.b16 %v1321, %v1320
    %v1334 = vpack.c.b16 %v1323, %v1322
    %v1335 = vpack.c.b16 %v1325, %v1324
    %v1336 = vpack.c.b16 %v1327, %v1326
    %v1337 = vpack.c.b16 %v1329, %v1328
    %1346 = vmatprep.subr.bf16.mxu0 0
    %1347 = vmatpush1.bf16.msra.mxu0 %v1330
    %1348 = vmatprep.subr.bf16.mxu0 0
    %1349 = vmatpush1.bf16.msra.mxu0 %v1331
    %1350 = vmatprep.subr.bf16.mxu0 0
    %1351 = vmatpush1.bf16.msra.mxu0 %v1332
    %1352 = vmatprep.subr.bf16.mxu0 0
    %1353 = vmatpush1.bf16.msra.mxu0 %v1333
    %1354 = vmatprep.subr.bf16.mxu0 0
    %1355 = vmatpush1.bf16.msra.mxu0 %v1334
    %1356 = vmatprep.subr.bf16.mxu0 0
    %1357 = vmatpush1.bf16.msra.mxu0 %v1335
    %1358 = vmatprep.subr.bf16.mxu0 0
    %1359 = vmatpush1.bf16.msra.mxu0 %v1336
    %1360 = vmatprep.subr.bf16.mxu0 0
    %1361 = vmatpush1.bf16.msra.mxu0 %v1337
    %1362 = vmatprep.subr.bf16.mxu0 0
    %1363 = vmatpush1.bf16.msra.mxu0 0
    %1364 = vmatprep.subr.bf16.mxu0 0
    %1365 = vmatpush1.bf16.msra.mxu0 0
    %1366 = vmatprep.subr.bf16.mxu0 0
    %1367 = vmatpush1.bf16.msra.mxu0 0
    %1368 = vmatprep.subr.bf16.mxu0 0
    %1369 = vmatpush1.bf16.msra.mxu0 0
    %1370 = vmatprep.subr.bf16.mxu0 0
    %1371 = vmatpush1.bf16.msra.mxu0 0
    %1372 = vmatprep.subr.bf16.mxu0 0
    %1373 = vmatpush1.bf16.msra.mxu0 0
    %1374 = vmatprep.subr.bf16.mxu0 0
    %1375 = vmatpush1.bf16.msra.mxu0 0
    %1376 = vmatprep.subr.bf16.mxu0 0
    %1377 = vmatpush1.bf16.msra.mxu0 0
    %1378 = vmatprep.mubr.bf16.mxu0 0
    %1379 = vmatmul.mubr.bf16.gmra.mrb[0].mxu0 %v814
    %v1380 = vpop.f32.mrb[0].mxu0
    %v1381 = vadd.f32 0.0, %v1380
    %v1382 = vpop.f32.mrb[0].mxu0
    %v1383 = vpop.f32.mrb[0].mxu0
    %v1384 = vpop.f32.mrb[0].mxu0
    %1385 = vdwg.mxu0
    %v1402 = vunpack.c.l.b16 %v898
    %v1403 = vunpack.c.l.b16 %v899
    %v1404 = vunpack.c.l.b16 %v900
    %v1405 = vunpack.c.l.b16 %v901
    %v1406 = vunpack.c.l.b16 %v902
    %v1407 = vunpack.c.l.b16 %v903
    %v1408 = vunpack.c.l.b16 %v904
    %v1409 = vunpack.c.l.b16 %v905
    %v1410 = vunpack.c.l.b16 %v906
    %v1411 = vunpack.c.l.b16 %v907
    %v1412 = vunpack.c.l.b16 %v908
    %v1413 = vunpack.c.l.b16 %v909
    %v1414 = vunpack.c.l.b16 %v910
    %v1415 = vunpack.c.l.b16 %v911
    %v1416 = vunpack.c.l.b16 %v912
    %v1417 = vunpack.c.l.b16 %v913
    %v1418 = vpack.c.b16 %v1403, %v1402
    %v1419 = vpack.c.b16 %v1405, %v1404
    %v1420 = vpack.c.b16 %v1407, %v1406
    %v1421 = vpack.c.b16 %v1409, %v1408
    %v1422 = vpack.c.b16 %v1411, %v1410
    %v1423 = vpack.c.b16 %v1413, %v1412
    %v1424 = vpack.c.b16 %v1415, %v1414
    %v1425 = vpack.c.b16 %v1417, %v1416
    %1434 = vmatprep.subr.bf16.mxu0 0
    %1435 = vmatpush1.bf16.msra.mxu0 %v1418
    %1436 = vmatprep.subr.bf16.mxu0 0
    %1437 = vmatpush1.bf16.msra.mxu0 %v1419
    %1438 = vmatprep.subr.bf16.mxu0 0
    %1439 = vmatpush1.bf16.msra.mxu0 %v1420
    %1440 = vmatprep.subr.bf16.mxu0 0
    %1441 = vmatpush1.bf16.msra.mxu0 %v1421
    %1442 = vmatprep.subr.bf16.mxu0 0
    %1443 = vmatpush1.bf16.msra.mxu0 %v1422
    %1444 = vmatprep.subr.bf16.mxu0 0
    %1445 = vmatpush1.bf16.msra.mxu0 %v1423
    %1446 = vmatprep.subr.bf16.mxu0 0
    %1447 = vmatpush1.bf16.msra.mxu0 %v1424
    %1448 = vmatprep.subr.bf16.mxu0 0
    %1449 = vmatpush1.bf16.msra.mxu0 %v1425
    %1450 = vmatprep.subr.bf16.mxu0 0
    %1451 = vmatpush1.bf16.msra.mxu0 0
    %1452 = vmatprep.subr.bf16.mxu0 0
    %1453 = vmatpush1.bf16.msra.mxu0 0
    %1454 = vmatprep.subr.bf16.mxu0 0
    %1455 = vmatpush1.bf16.msra.mxu0 0
    %1456 = vmatprep.subr.bf16.mxu0 0
    %1457 = vmatpush1.bf16.msra.mxu0 0
    %1458 = vmatprep.subr.bf16.mxu0 0
    %1459 = vmatpush1.bf16.msra.mxu0 0
    %1460 = vmatprep.subr.bf16.mxu0 0
    %1461 = vmatpush1.bf16.msra.mxu0 0
    %1462 = vmatprep.subr.bf16.mxu0 0
    %1463 = vmatpush1.bf16.msra.mxu0 0
    %1464 = vmatprep.subr.bf16.mxu0 0
    %1465 = vmatpush1.bf16.msra.mxu0 0
    %1466 = vmatprep.mubr.bf16.mxu0 0
    %1467 = vmatmul.mubr.bf16.gmra.mrb[0].mxu0 %v815
    %v1468 = vpop.f32.mrb[0].mxu0
    %v1469 = vadd.f32 0.0, %v1468
    %v1470 = vpop.f32.mrb[0].mxu0
    %v1471 = vpop.f32.mrb[0].mxu0
    %v1472 = vpop.f32.mrb[0].mxu0
    %1473 = vdwg.mxu0
    %v1490 = vunpack.c.l.b16 %v914
    %v1491 = vunpack.c.l.b16 %v915
    %v1492 = vunpack.c.l.b16 %v916
    %v1493 = vunpack.c.l.b16 %v917
    %v1494 = vunpack.c.l.b16 %v918
    %v1495 = vunpack.c.l.b16 %v919
    %v1496 = vunpack.c.l.b16 %v920
    %v1497 = vunpack.c.l.b16 %v921
    %v1498 = vunpack.c.l.b16 %v922
    %v1499 = vunpack.c.l.b16 %v923
    %v1500 = vunpack.c.l.b16 %v924
    %v1501 = vunpack.c.l.b16 %v925
    %v1502 = vunpack.c.l.b16 %v926
    %v1503 = vunpack.c.l.b16 %v927
    %v1504 = vunpack.c.l.b16 %v928
    %v1505 = vunpack.c.l.b16 %v929
    %v1506 = vpack.c.b16 %v1491, %v1490
    %v1507 = vpack.c.b16 %v1493, %v1492
    %v1508 = vpack.c.b16 %v1495, %v1494
    %v1509 = vpack.c.b16 %v1497, %v1496
    %v1510 = vpack.c.b16 %v1499, %v1498
    %v1511 = vpack.c.b16 %v1501, %v1500
    %v1512 = vpack.c.b16 %v1503, %v1502
    %v1513 = vpack.c.b16 %v1505, %v1504
    %1522 = vmatprep.subr.bf16.mxu0 0
    %1523 = vmatpush1.bf16.msra.mxu0 %v1506
    %1524 = vmatprep.subr.bf16.mxu0 0
    %1525 = vmatpush1.bf16.msra.mxu0 %v1507
    %1526 = vmatprep.subr.bf16.mxu0 0
    %1527 = vmatpush1.bf16.msra.mxu0 %v1508
    %1528 = vmatprep.subr.bf16.mxu0 0
    %1529 = vmatpush1.bf16.msra.mxu0 %v1509
    %1530 = vmatprep.subr.bf16.mxu0 0
    %1531 = vmatpush1.bf16.msra.mxu0 %v1510
    %1532 = vmatprep.subr.bf16.mxu0 0
    %1533 = vmatpush1.bf16.msra.mxu0 %v1511
    %1534 = vmatprep.subr.bf16.mxu0 0
    %1535 = vmatpush1.bf16.msra.mxu0 %v1512
    %1536 = vmatprep.subr.bf16.mxu0 0
    %1537 = vmatpush1.bf16.msra.mxu0 %v1513
    %1538 = vmatprep.subr.bf16.mxu0 0
    %1539 = vmatpush1.bf16.msra.mxu0 0
    %1540 = vmatprep.subr.bf16.mxu0 0
    %1541 = vmatpush1.bf16.msra.mxu0 0
    %1542 = vmatprep.subr.bf16.mxu0 0
    %1543 = vmatpush1.bf16.msra.mxu0 0
    %1544 = vmatprep.subr.bf16.mxu0 0
    %1545 = vmatpush1.bf16.msra.mxu0 0
    %1546 = vmatprep.subr.bf16.mxu0 0
    %1547 = vmatpush1.bf16.msra.mxu0 0
    %1548 = vmatprep.subr.bf16.mxu0 0
    %1549 = vmatpush1.bf16.msra.mxu0 0
    %1550 = vmatprep.subr.bf16.mxu0 0
    %1551 = vmatpush1.bf16.msra.mxu0 0
    %1552 = vmatprep.subr.bf16.mxu0 0
    %1553 = vmatpush1.bf16.msra.mxu0 0
    %1554 = vmatprep.mubr.bf16.mxu0 0
    %1555 = vmatmul.mubr.bf16.gmra.mrb[0].mxu0 %v816
    %v1556 = vpop.f32.mrb[0].mxu0
    %v1557 = vadd.f32 0.0, %v1556
    %v1558 = vpop.f32.mrb[0].mxu0
    %v1559 = vpop.f32.mrb[0].mxu0
    %v1560 = vpop.f32.mrb[0].mxu0
    %1561 = vdwg.mxu0
    %v1578 = vunpack.c.l.b16 %v930
    %v1579 = vunpack.c.l.b16 %v931
    %v1580 = vunpack.c.l.b16 %v932
    %v1581 = vunpack.c.l.b16 %v933
    %v1582 = vunpack.c.l.b16 %v934
    %v1583 = vunpack.c.l.b16 %v935
    %v1584 = vunpack.c.l.b16 %v936
    %v1585 = vunpack.c.l.b16 %v937
    %v1586 = vunpack.c.l.b16 %v938
    %v1587 = vunpack.c.l.b16 %v939
    %v1588 = vunpack.c.l.b16 %v940
    %v1589 = vunpack.c.l.b16 %v941
    %v1590 = vunpack.c.l.b16 %v942
    %v1591 = vunpack.c.l.b16 %v943
    %v1592 = vunpack.c.l.b16 %v944
    %v1593 = vunpack.c.l.b16 %v945
    %v1594 = vpack.c.b16 %v1579, %v1578
    %v1595 = vpack.c.b16 %v1581, %v1580
    %v1596 = vpack.c.b16 %v1583, %v1582
    %v1597 = vpack.c.b16 %v1585, %v1584
    %v1598 = vpack.c.b16 %v1587, %v1586
    %v1599 = vpack.c.b16 %v1589, %v1588
    %v1600 = vpack.c.b16 %v1591, %v1590
    %v1601 = vpack.c.b16 %v1593, %v1592
    %1610 = vmatprep.subr.bf16.mxu0 0
    %1611 = vmatpush1.bf16.msra.mxu0 %v1594
    %1612 = vmatprep.subr.bf16.mxu0 0
    %1613 = vmatpush1.bf16.msra.mxu0 %v1595
    %1614 = vmatprep.subr.bf16.mxu0 0
    %1615 = vmatpush1.bf16.msra.mxu0 %v1596
    %1616 = vmatprep.subr.bf16.mxu0 0
    %1617 = vmatpush1.bf16.msra.mxu0 %v1597
    %1618 = vmatprep.subr.bf16.mxu0 0
    %1619 = vmatpush1.bf16.msra.mxu0 %v1598
    %1620 = vmatprep.subr.bf16.mxu0 0
    %1621 = vmatpush1.bf16.msra.mxu0 %v1599
    %1622 = vmatprep.subr.bf16.mxu0 0
    %1623 = vmatpush1.bf16.msra.mxu0 %v1600
    %1624 = vmatprep.subr.bf16.mxu0 0
    %1625 = vmatpush1.bf16.msra.mxu0 %v1601
    %1626 = vmatprep.subr.bf16.mxu0 0
    %1627 = vmatpush1.bf16.msra.mxu0 0
    %1628 = vmatprep.subr.bf16.mxu0 0
    %1629 = vmatpush1.bf16.msra.mxu0 0
    %1630 = vmatprep.subr.bf16.mxu0 0
    %1631 = vmatpush1.bf16.msra.mxu0 0
    %1632 = vmatprep.subr.bf16.mxu0 0
    %1633 = vmatpush1.bf16.msra.mxu0 0
    %1634 = vmatprep.subr.bf16.mxu0 0
    %1635 = vmatpush1.bf16.msra.mxu0 0
    %1636 = vmatprep.subr.bf16.mxu0 0
    %1637 = vmatpush1.bf16.msra.mxu0 0
    %1638 = vmatprep.subr.bf16.mxu0 0
    %1639 = vmatpush1.bf16.msra.mxu0 0
    %1640 = vmatprep.subr.bf16.mxu0 0
    %1641 = vmatpush1.bf16.msra.mxu0 0
    %1642 = vmatprep.mubr.bf16.mxu0 0
    %1643 = vmatmul.mubr.bf16.gmra.mrb[0].mxu0 %v817
    %v1644 = vpop.f32.mrb[0].mxu0
    %v1645 = vadd.f32 0.0, %v1644
    %v1646 = vpop.f32.mrb[0].mxu0
    %v1647 = vpop.f32.mrb[0].mxu0
    %v1648 = vpop.f32.mrb[0].mxu0
    %1649 = vdwg.mxu0
    %v1658 = vrot.slane %v1117, 7
    %v1659 = vsel %vm726, %v1658, %v1029
    %v1660 = vrot.slane %v1205, 6
    %v1661 = vsel %vm728, %v1660, %v1659
    %v1662 = vrot.slane %v1293, 5
    %v1663 = vsel %vm730, %v1662, %v1661
    %v1664 = vrot.slane %v1381, 4
    %v1665 = vsel %vm732, %v1664, %v1663
    %v1666 = vrot.slane %v1469, 3
    %v1667 = vsel %vm734, %v1666, %v1665
    %v1668 = vrot.slane %v1557, 2
    %v1669 = vsel %vm736, %v1668, %v1667
    %v1670 = vrot.slane %v1645, 1
    %v1671 = vsel %vm738, %v1670, %v1669
    %vm1673 = vcmask 261120
    %1674 = vst.msk [vmem:[#allocation2] sm:$0xff] %vm1673, %v1671
    // Predicated region
    $region30: #{tpu_custom_call.1} parent=1 // pred_check
      _
    $region31: #{tpu_custom_call.1} parent=1 // pred_check_branch
      %1676 = sbr.rel (0) target = $region33
    $region32: #{tpu_custom_call.1} parent=1 // pred_region
      %s1678 = ssub.s32 128, 128
      %1679 = vsyncadd [#allocation3], %s1678
      %s1681 = sshll.u32 [#allocation2], 4
      %s1682 = int_to_ptr.vmem [resolvable:$true] %s1681
      %1684 = dma.vmem_to_hbm [thread:$0]  %s1682, 128, %s7, [#allocation3]
    $region33: #{tpu_custom_call.1} parent=1 // pred_fallthru
      _
    // Predicated region
    $region34: #{tpu_custom_call.1} parent=1 // pred_check
      _
    $region35: #{tpu_custom_call.1} parent=1 // pred_check_branch
      %1686 = sbr.rel (0) target = $region37
    $region36: #{tpu_custom_call.1} parent=1 // pred_region
      %s1688 = ssub.s32 128, 128
      %1689 = vsyncadd [#allocation5], %s1688
      %s1691 = sshll.u32 [#allocation4], 4
      %s1692 = int_to_ptr.vmem [resolvable:$true] %s1691
      %1694 = dma.vmem_to_hbm [thread:$0]  %s1692, 128, %s8, [#allocation5]
    $region37: #{tpu_custom_call.1} parent=1 // pred_fallthru
      _
    // Predicated region
    $region38: #{tpu_custom_call.1} parent=1 // pred_check
      _
    $region39: #{tpu_custom_call.1} parent=1 // pred_check_branch
      %1696 = sbr.rel (0) target = $region41
    $region40: #{tpu_custom_call.1} parent=1 // pred_region
      %1697 = dma.done [#allocation3], 128
    $region41: #{tpu_custom_call.1} parent=1 // pred_fallthru
      _
    // Predicated region
    $region42: #{tpu_custom_call.1} parent=1 // pred_check
      _
    $region43: #{tpu_custom_call.1} parent=1 // pred_check_branch
      %1699 = sbr.rel (0) target = $region45
    $region44: #{tpu_custom_call.1} parent=1 // pred_region
      %1700 = dma.done [#allocation5], 128
    $region45: #{tpu_custom_call.1} parent=1 // pred_fallthru
      _
    %1701 = vsyncpa [#allocation3], 1
    %1702 = vsyncpa [#allocation5], 1

</llo_original>
